<compile_context>
chip_gen: v7x
topology: tpu7x:2x2x1
jax: 0.10.0
libtpu: 0.0.40
codegen_flags: <defaults>
</compile_context>

<pallas_src>
import jax
import jax.numpy as jnp
from jax.experimental import pallas as pl
from jax.experimental.pallas import tpu as pltpu


# ----------------------------------------------------------------------------- kernel ----
def transfer_kernel(x_ref, w_ext_ref, b_ext_ref, w_head_ref, b_head_ref, out_ref, acc_ref):
    # Grid: (batch tile i, HW reduction chunk k).
    # acc_ref: (TB, C, LANE) f32 lane-aligned partial-sum accumulator.
    k = pl.program_id(1)

    @pl.when(k == 0)
    def _init():
        acc_ref[...] = jnp.zeros_like(acc_ref)

    # Hot loop: lane-aligned LANE-wide slice adds (pure VPU, no cross-lane XLU work).
    lane = acc_ref.shape[-1]
    n_chunks = x_ref.shape[-1] // lane
    acc = acc_ref[...]
    for c in range(n_chunks):  # static unroll; slices are 128-lane aligned views
        acc = acc + x_ref[:, :, c * lane:(c + 1) * lane].astype(jnp.float32)
    acc_ref[...] = acc

    @pl.when(k == pl.num_programs(1) - 1)
    def _finalize():
        # One cross-lane reduce per batch tile (outside the hot loop).
        pooled = jnp.sum(acc_ref[...], axis=-1)                       # (TB, C) = HW * mean
        # Extractor projection + ReLU (the 1/HW mean scale is folded into w_ext).
        p = jnp.dot(pooled, w_ext_ref[...], preferred_element_type=jnp.float32)
        p = jnp.maximum(p + b_ext_ref[...], 0.0)                      # (TB, nftr)
        # nn.Dropout(0.2): identity in eval mode (no-op).
        logits = jnp.dot(p, w_head_ref[...], preferred_element_type=jnp.float32)
        out_ref[...] = (logits + b_head_ref[...]).astype(out_ref.dtype)  # (TB, nclass_p)


# ------------------------------------------------------------------------- tile sizing ----
def _round_up(v, m):
    return -(-v // m) * m


def _tpu_generation_caps():
    """(vmem_budget_bytes, vmem_limit_bytes, tb_cap, want_two_batch_tiles) per generation."""
    kind = ""
    try:
        kind = jax.devices()[0].device_kind.lower()
    except Exception:
        pass
    vmem_cap = None
    try:
        vmem_cap = int(pltpu.get_tpu_info().vmem_capacity_bytes)
    except Exception:
        vmem_cap = None
    if vmem_cap is None or vmem_cap <= 0:
        if "v7" in kind or not kind:
            vmem_cap = 64 << 20          # v7x: 64 MiB per TensorCore (binding case)
        elif "v2" in kind:
            vmem_cap = 16 << 20
        elif "v3" in kind:
            vmem_cap = 32 << 20
        else:
            vmem_cap = 128 << 20         # v4 / v5e / v6e
    budget = int(vmem_cap * 0.70)                    # our blocks + scratch
    vmem_limit = min(vmem_cap, budget + (8 << 20))   # headroom for compiler internals
    tb_cap = 128 if "v5" in kind else 256            # v6e/v7x MXU is 256 wide
    want_two_batch_tiles = "v7" in kind              # 2 TensorCores per chip on v7x
    return budget, vmem_limit, tb_cap, want_two_batch_tiles


def _pick_hw_tile(HW, max_lanes):
    """Largest 128-aligned divisor of HW that is <= max_lanes; full HW if not 128-aligned."""
    if HW % 128 != 0:
        return HW  # block must equal the full dim if HW is not lane-aligned
    t = max(128, min(HW, (max_lanes // 128) * 128))
    while t > 128 and HW % t != 0:
        t -= 128
    return t


def _select_tiles(B_p, C, HW, nftr, nclass_p, x_itemsize, budget_bytes, tb_cap):
    """Jointly pick (TB, hw_tile) so the full double-buffered footprint fits the budget."""
    # Weights/biases budgeted conservatively as double-buffered (single-buffer is requested
    # via pl.Buffered(1) but may fall back).
    w_bytes = 2 * 4 * (C * nftr + nftr + nftr * nclass_p + nclass_p)

    def fits(tb, hw):
        lane = 128 if hw % 128 == 0 else hw
        total = (w_bytes
                 + 2 * tb * C * hw * x_itemsize      # double-buffered x stream
                 + 2 * tb * nclass_p * 4             # double-buffered output tile
                 + tb * C * lane * 4)                # accumulator scratch
        return total <= budget_bytes

    # Batch-tile candidates: multiples of 8 dividing B_p, largest first, capped.
    cands = [t for t in range((min(tb_cap, B_p) // 8) * 8, 0, -8) if B_p % t == 0]
    if not cands:
        cands = [B_p]

    # Prefer a 512-1024-lane streamed block, then maximize the batch tile.
    hw = _pick_hw_tile(HW, 1024)
    while True:
        for tb in cands:
            if fits(tb, hw):
                return tb, hw
        if hw > 128 and HW % 128 == 0:
            nxt = hw - 128
            while nxt > 128 and HW % nxt != 0:
                nxt -= 128
            hw = nxt
        else:
            return cands[-1], hw  # nothing fits: smallest batch tile, smallest legal hw tile


# ---------------------------------------------------------------------------- wrappers ----
def prepare_transfer_params(w_ext, b_ext, w_head, b_head, spatial_size):
    """One-time weight preprocessing (hoist out of the per-call path / let jit fold it):
    folds the 1/HW mean scale into w_ext and zero-pads the head to a multiple of 128
    classes so the kernel output stays lane-dense."""
    C, nftr = w_ext.shape
    nclass = w_head.shape[1]
    nclass_p = max(128, _round_up(nclass, 128))
    w_ext_s = w_ext.astype(jnp.float32) * (1.0 / float(spatial_size))
    b_ext2 = b_ext.reshape(1, nftr).astype(jnp.float32)
    w_head_p = jnp.zeros((nftr, nclass_p), jnp.float32).at[:, :nclass].set(
        w_head.astype(jnp.float32))
    b_head_p = jnp.zeros((1, nclass_p), jnp.float32).at[:, :nclass].set(
        b_head.reshape(1, nclass).astype(jnp.float32))
    return (w_ext_s, b_ext2, w_head_p, b_head_p), nclass


def transfer_apply(x_nchw, prepared, *, hw_tile=None, tb=None):
    """x_nchw: (B, C, H, W) float32/bfloat16.  Returns logits (B, nclass) float32."""
    (w_ext_s, b_ext2, w_head_p, b_head_p), nclass = prepared
    B, C, H, W = x_nchw.shape
    HW = H * W
    nftr = w_ext_s.shape[1]
    nclass_p = w_head_p.shape[1]

    # Free reshape (no data movement): channels stay on sublanes, HW fills the lanes.
    x = x_nchw.reshape(B, C, HW)

    # Keep the batch a multiple of 8 so batch tiles stay sublane-legal; padded rows are
    # independent garbage and get sliced off at the end.
    B_p = _round_up(max(B, 1), 8)
    if B_p != B:
        x = jnp.zeros((B_p, C, HW), x.dtype).at[:B].set(x)

    budget_bytes, vmem_limit, tb_cap, want_two_tiles = _tpu_generation_caps()
    TB_auto, hw_auto = _select_tiles(B_p, C, HW, nftr, nclass_p,
                                     jnp.dtype(x.dtype).itemsize, budget_bytes, tb_cap)
    TB = TB_auto if tb is None else tb
    hw_tile = hw_auto if hw_tile is None else hw_tile
    assert B_p % TB == 0 and (TB % 8 == 0 or TB == B_p)
    assert HW % hw_tile == 0 and (hw_tile % 128 == 0 or hw_tile == HW)

    # v7x: make sure both TensorCores get a batch tile when the batch allows it.
    if want_two_tiles and tb is None and B_p // TB < 2 and B_p >= 16:
        t = TB - 8
        while t >= 8 and B_p % t != 0:
            t -= 8
        if t >= 8:
            TB = t

    LANE = 128 if hw_tile % 128 == 0 else hw_tile
    nb, nk = B_p // TB, HW // hw_tile

    def run(single_buffer_weights):
        # Constant-index operands never re-DMA; single-buffering them frees a full copy of
        # each weight in VMEM (biggest relative win on v7x's 64 MiB).
        wkw = dict(pipeline_mode=pl.Buffered(1)) if single_buffer_weights else {}
        return pl.pallas_call(
            transfer_kernel,
            out_shape=jax.ShapeDtypeStruct((B_p, nclass_p), jnp.float32),
            grid=(nb, nk),
            in_specs=[
                pl.BlockSpec((TB, C, hw_tile), lambda i, k: (i, 0, k)),       # x stream
                pl.BlockSpec((C, nftr), lambda i, k: (0, 0), **wkw),          # extractor W
                pl.BlockSpec((1, nftr), lambda i, k: (0, 0), **wkw),          # extractor b
                pl.BlockSpec((nftr, nclass_p), lambda i, k: (0, 0), **wkw),   # head W (padded)
                pl.BlockSpec((1, nclass_p), lambda i, k: (0, 0), **wkw),      # head b (padded)
            ],
            out_specs=pl.BlockSpec((TB, nclass_p), lambda i, k: (i, 0)),      # lane-dense out
            scratch_shapes=[pltpu.VMEM((TB, C, LANE), jnp.float32)],          # VPU accumulator
            compiler_params=pltpu.CompilerParams(
                dimension_semantics=("parallel", "arbitrary"),
                vmem_limit_bytes=int(vmem_limit),
            ),
        )(x, w_ext_s, b_ext2, w_head_p, b_head_p)

    try:
        out_p = run(True)
    except Exception:
        # Fallback for jax versions where pl.Buffered(1)/pipeline_mode is unsupported.
        out_p = run(False)

    return out_p[:B, :nclass]


def transfer_forward(x_nchw, w_ext, b_ext, w_head, b_head, *, hw_tile=None):
    """Convenience wrapper; prefer prepare_transfer_params() once + transfer_apply()."""
    B, C, H, W = x_nchw.shape
    prepared = prepare_transfer_params(w_ext, b_ext, w_head, b_head, H * W)
    return transfer_apply(x_nchw, prepared, hw_tile=hw_tile)


def reference_forward(x_nchw, w_ext, b_ext, w_head, b_head):
    B, C, H, W = x_nchw.shape
    pooled = jnp.mean(x_nchw.reshape(B, C, H * W), axis=-1)          # (B, C)
    p = jnp.maximum(pooled @ w_ext + b_ext.reshape(-1), 0.0)         # (B, nftr)
    return p @ w_head + b_head.reshape(-1)                           # (B, nclass)


# ------------------------------------------------------------------------------- main ----
if __name__ == "__main__":
    # Small shapes consistent with the module: batch=2, channels=4, spatial=16,
    # nftr=32, nclass=10.
    # TODO(synk): the real `extractor` backbone is injected in PyTorch; it is realized here
    # as a deterministic GAP + Linear + ReLU stand-in.
    B, C, H, W = 2, 4, 16, 16
    nftr, nclass = 32, 10

    key = jax.random.PRNGKey(0)
    kx, k1, k2, k3, k4 = jax.random.split(key, 5)

    x = jax.random.normal(kx, (B, C, H, W), dtype=jnp.float32)

    w_ext = jax.random.normal(k1, (C, nftr), dtype=jnp.float32) * 0.1
    b_ext = jax.random.normal(k2, (1, nftr), dtype=jnp.float32) * 0.01
    w_head = jax.random.normal(k3, (nftr, nclass), dtype=jnp.float32) * 0.1
    b_head = jax.random.normal(k4, (1, nclass), dtype=jnp.float32) * 0.01

    # One-time weight preprocessing (hoisted out of the per-call path).
    prepared = prepare_transfer_params(w_ext, b_ext, w_head, b_head, H * W)

    # hw_tile=128 forces a 2-step spatial reduction so the accumulator path is exercised.
    out = transfer_apply(x, prepared, hw_tile=128)
    out = jax.block_until_ready(out)

    ref = reference_forward(x, w_ext, b_ext, w_head, b_head)
    assert out.shape == (B, nclass)
    assert jnp.allclose(out, ref, atol=1e-4, rtol=1e-4)

    print("KERNEL_OK")
</pallas_src>

<mosaic_0001>
module attributes {stable_mosaic.version = 11 : i64} {
  func.func @transfer_kernel(%arg0: i32, %arg1: i32, %arg2: memref<8x4x128xf32, #tpu.memory_space<vmem>>, %arg3: memref<4x32xf32, #tpu.memory_space<vmem>>, %arg4: memref<1x32xf32, #tpu.memory_space<vmem>>, %arg5: memref<32x128xf32, #tpu.memory_space<vmem>>, %arg6: memref<1x128xf32, #tpu.memory_space<vmem>>, %arg7: memref<8x128xf32, #tpu.memory_space<vmem>>, %arg8: memref<8x4x128xf32, #tpu.memory_space<vmem>>) attributes {dimension_semantics = [#tpu.dimension_semantics<parallel>, #tpu.dimension_semantics<arbitrary>], iteration_bounds = array<i64: 1, 2>, scalar_prefetch = 0 : i64, scratch_operands = 1 : i64, tpu.core_type = #tpu.core_type<tc>, window_params = [{transform_indices = @transform_0, window_bounds = array<i64: 8, 4, 128>}, {pipeline_mode = #tpu.pipeline_mode<synchronous>, transform_indices = @transform_1, window_bounds = array<i64: 4, 32>}, {pipeline_mode = #tpu.pipeline_mode<synchronous>, transform_indices = @transform_2, window_bounds = array<i64: 1, 32>}, {pipeline_mode = #tpu.pipeline_mode<synchronous>, transform_indices = @transform_3, window_bounds = array<i64: 32, 128>}, {pipeline_mode = #tpu.pipeline_mode<synchronous>, transform_indices = @transform_4, window_bounds = array<i64: 1, 128>}, {transform_indices = @transform_5, window_bounds = array<i64: 8, 128>}]} {
    %c0_i32 = arith.constant 0 : i32
    %0 = arith.cmpi eq, %arg1, %c0_i32 : i32
    %1 = arith.extui %0 : i1 to i32
    %c0_i32_0 = arith.constant 0 : i32
    %2 = arith.cmpi ne, %1, %c0_i32_0 : i32
    scf.if %2 {
      %cst = arith.constant 0.000000e+00 : f32
      %10 = vector.broadcast %cst : f32 to vector<8x4x128xf32>
      %c0_10 = arith.constant 0 : index
      %c0_11 = arith.constant 0 : index
      %c0_12 = arith.constant 0 : index
      %11 = vector.load %arg8[%c0_10, %c0_11, %c0_12] : memref<8x4x128xf32, #tpu.memory_space<vmem>>, vector<8x4x128xf32>
      tpu.vector_store %arg8[%c0_10, %c0_11, %c0_12], %10 {strides = array<i32>} : memref<8x4x128xf32, #tpu.memory_space<vmem>>, vector<8x4x128xf32>,
    } else {
    }
    %c0 = arith.constant 0 : index
    %c0_1 = arith.constant 0 : index
    %c0_2 = arith.constant 0 : index
    %3 = vector.load %arg8[%c0, %c0_1, %c0_2] : memref<8x4x128xf32, #tpu.memory_space<vmem>>, vector<8x4x128xf32>
    %c0_3 = arith.constant 0 : index
    %c0_4 = arith.constant 0 : index
    %c0_5 = arith.constant 0 : index
    %4 = vector.load %arg2[%c0_3, %c0_4, %c0_5] : memref<8x4x128xf32, #tpu.memory_space<vmem>>, vector<8x4x128xf32>
    %5 = arith.addf %3, %4 : vector<8x4x128xf32>
    %c0_6 = arith.constant 0 : index
    %c0_7 = arith.constant 0 : index
    %c0_8 = arith.constant 0 : index
    %6 = vector.load %arg8[%c0_6, %c0_7, %c0_8] : memref<8x4x128xf32, #tpu.memory_space<vmem>>, vector<8x4x128xf32>
    tpu.vector_store %arg8[%c0_6, %c0_7, %c0_8], %5 {strides = array<i32>} : memref<8x4x128xf32, #tpu.memory_space<vmem>>, vector<8x4x128xf32>,
    %c1_i32 = arith.constant 1 : i32
    %7 = arith.cmpi eq, %arg1, %c1_i32 : i32
    %8 = arith.extui %7 : i1 to i32
    %c0_i32_9 = arith.constant 0 : i32
    %9 = arith.cmpi ne, %8, %c0_i32_9 : i32
    scf.if %9 {
      %c0_10 = arith.constant 0 : index
      %c0_11 = arith.constant 0 : index
      %c0_12 = arith.constant 0 : index
      %10 = vector.load %arg8[%c0_10, %c0_11, %c0_12] : memref<8x4x128xf32, #tpu.memory_space<vmem>>, vector<8x4x128xf32>
      %cst = arith.constant dense<0.000000e+00> : vector<8x4xf32>
      %11 = vector.multi_reduction <add>, %10, %cst [2] : vector<8x4x128xf32> to vector<8x4xf32>
      %c0_13 = arith.constant 0 : index
      %c0_14 = arith.constant 0 : index
      %12 = vector.load %arg3[%c0_13, %c0_14] : memref<4x32xf32, #tpu.memory_space<vmem>>, vector<4x32xf32>
      %cst_15 = arith.constant dense<0.000000e+00> : vector<8x32xf32>
      %13 = tpu.matmul %11, %12, %cst_15 {dimension_numbers = #tpu.dot_dimension_numbers<[1], [0], [0], [1], [0, 0, 1, 1], [], []>} : vector<8x4xf32>, vector<4x32xf32>, vector<8x32xf32> -> vector<8x32xf32>
      %c0_16 = arith.constant 0 : index
      %c0_17 = arith.constant 0 : index
      %14 = vector.load %arg4[%c0_16, %c0_17] : memref<1x32xf32, #tpu.memory_space<vmem>>, vector<1x32xf32>
      %15 = vector.broadcast %14 : vector<1x32xf32> to vector<8x32xf32>
      %16 = arith.addf %13, %15 : vector<8x32xf32>
      %cst_18 = arith.constant 0.000000e+00 : f32
      %17 = vector.broadcast %cst_18 : f32 to vector<8x32xf32>
      %18 = arith.maximumf %16, %17 : vector<8x32xf32>
      %c0_19 = arith.constant 0 : index
      %c0_20 = arith.constant 0 : index
      %19 = vector.load %arg5[%c0_19, %c0_20] : memref<32x128xf32, #tpu.memory_space<vmem>>, vector<32x128xf32>
      %cst_21 = arith.constant dense<0.000000e+00> : vector<8x128xf32>
      %20 = tpu.matmul %18, %19, %cst_21 {dimension_numbers = #tpu.dot_dimension_numbers<[1], [0], [0], [1], [0, 0, 1, 1], [], []>} : vector<8x32xf32>, vector<32x128xf32>, vector<8x128xf32> -> vector<8x128xf32>
      %c0_22 = arith.constant 0 : index
      %c0_23 = arith.constant 0 : index
      %21 = vector.load %arg6[%c0_22, %c0_23] : memref<1x128xf32, #tpu.memory_space<vmem>>, vector<1x128xf32>
      %22 = vector.broadcast %21 : vector<1x128xf32> to vector<8x128xf32>
      %23 = arith.addf %20, %22 : vector<8x128xf32>
      %c0_24 = arith.constant 0 : index
      %c0_25 = arith.constant 0 : index
      %24 = vector.load %arg7[%c0_24, %c0_25] : memref<8x128xf32, #tpu.memory_space<vmem>>, vector<8x128xf32>
      tpu.vector_store %arg7[%c0_24, %c0_25], %23 {strides = array<i32>} : memref<8x128xf32, #tpu.memory_space<vmem>>, vector<8x128xf32>,
    } else {
    }
    return
  }
  func.func @transform_0(%arg0: i32, %arg1: i32) -> (i32, i32, i32) {
    %c0_i32 = arith.constant 0 : i32
    %c0_i32_0 = arith.constant 0 : i32
    return %arg0, %c0_i32, %arg1 : i32, i32, i32
  }
  func.func @transform_1(%arg0: i32, %arg1: i32) -> (i32, i32) {
    %c0_i32 = arith.constant 0 : i32
    %c0_i32_0 = arith.constant 0 : i32
    %c0_i32_1 = arith.constant 0 : i32
    return %c0_i32, %c0_i32_0 : i32, i32
  }
  func.func @transform_2(%arg0: i32, %arg1: i32) -> (i32, i32) {
    %c0_i32 = arith.constant 0 : i32
    %c0_i32_0 = arith.constant 0 : i32
    %c0_i32_1 = arith.constant 0 : i32
    return %c0_i32, %c0_i32_0 : i32, i32
  }
  func.func @transform_3(%arg0: i32, %arg1: i32) -> (i32, i32) {
    %c0_i32 = arith.constant 0 : i32
    %c0_i32_0 = arith.constant 0 : i32
    %c0_i32_1 = arith.constant 0 : i32
    return %c0_i32, %c0_i32_0 : i32, i32
  }
  func.func @transform_4(%arg0: i32, %arg1: i32) -> (i32, i32) {
    %c0_i32 = arith.constant 0 : i32
    %c0_i32_0 = arith.constant 0 : i32
    %c0_i32_1 = arith.constant 0 : i32
    return %c0_i32, %c0_i32_0 : i32, i32
  }
  func.func @transform_5(%arg0: i32, %arg1: i32) -> (i32, i32) {
    %c0_i32 = arith.constant 0 : i32
    %c0_i32_0 = arith.constant 0 : i32
    return %arg0, %c0_i32 : i32, i32
  }
}

module attributes {stable_mosaic.version = 11 : i64} {
  func.func @transfer_kernel(%arg0: i32, %arg1: i32, %arg2: memref<8x4x128xf32, #tpu.memory_space<vmem>>, %arg3: memref<4x32xf32, #tpu.memory_space<vmem>>, %arg4: memref<1x32xf32, #tpu.memory_space<vmem>>, %arg5: memref<32x128xf32, #tpu.memory_space<vmem>>, %arg6: memref<1x128xf32, #tpu.memory_space<vmem>>, %arg7: memref<8x128xf32, #tpu.memory_space<vmem>>, %arg8: memref<8x4x128xf32, #tpu.memory_space<vmem>>) attributes {dimension_semantics = [#tpu.dimension_semantics<parallel>, #tpu.dimension_semantics<arbitrary>], iteration_bounds = array<i64: 1, 2>, scalar_prefetch = 0 : i64, scratch_operands = 1 : i64, tpu.core_type = #tpu.core_type<tc>, window_params = [{transform_indices = @transform_0, window_bounds = array<i64: 8, 4, 128>}, {pipeline_mode = #tpu.pipeline_mode<synchronous>, transform_indices = @transform_1, window_bounds = array<i64: 4, 32>}, {pipeline_mode = #tpu.pipeline_mode<synchronous>, transform_indices = @transform_2, window_bounds = array<i64: 1, 32>}, {pipeline_mode = #tpu.pipeline_mode<synchronous>, transform_indices = @transform_3, window_bounds = array<i64: 32, 128>}, {pipeline_mode = #tpu.pipeline_mode<synchronous>, transform_indices = @transform_4, window_bounds = array<i64: 1, 128>}, {transform_indices = @transform_5, window_bounds = array<i64: 8, 128>}]} {
    %c0_i32 = arith.constant 0 : i32
    %0 = arith.cmpi eq, %arg1, %c0_i32 : i32
    %1 = arith.extui %0 : i1 to i32
    %c0_i32_0 = arith.constant 0 : i32
    %2 = arith.cmpi ne, %1, %c0_i32_0 : i32
    scf.if %2 {
      %cst = arith.constant 0.000000e+00 : f32
      %10 = vector.broadcast %cst : f32 to vector<8x4x128xf32>
      %c0_10 = arith.constant 0 : index
      %c0_11 = arith.constant 0 : index
      %c0_12 = arith.constant 0 : index
      %11 = vector.load %arg8[%c0_10, %c0_11, %c0_12] : memref<8x4x128xf32, #tpu.memory_space<vmem>>, vector<8x4x128xf32>
      tpu.vector_store %arg8[%c0_10, %c0_11, %c0_12], %10 {strides = array<i32>} : memref<8x4x128xf32, #tpu.memory_space<vmem>>, vector<8x4x128xf32>,
    } else {
    }
    %c0 = arith.constant 0 : index
    %c0_1 = arith.constant 0 : index
    %c0_2 = arith.constant 0 : index
    %3 = vector.load %arg8[%c0, %c0_1, %c0_2] : memref<8x4x128xf32, #tpu.memory_space<vmem>>, vector<8x4x128xf32>
    %c0_3 = arith.constant 0 : index
    %c0_4 = arith.constant 0 : index
    %c0_5 = arith.constant 0 : index
    %4 = vector.load %arg2[%c0_3, %c0_4, %c0_5] : memref<8x4x128xf32, #tpu.memory_space<vmem>>, vector<8x4x128xf32>
    %5 = arith.addf %3, %4 : vector<8x4x128xf32>
    %c0_6 = arith.constant 0 : index
    %c0_7 = arith.constant 0 : index
    %c0_8 = arith.constant 0 : index
    %6 = vector.load %arg8[%c0_6, %c0_7, %c0_8] : memref<8x4x128xf32, #tpu.memory_space<vmem>>, vector<8x4x128xf32>
    tpu.vector_store %arg8[%c0_6, %c0_7, %c0_8], %5 {strides = array<i32>} : memref<8x4x128xf32, #tpu.memory_space<vmem>>, vector<8x4x128xf32>,
    %c1_i32 = arith.constant 1 : i32
    %7 = arith.cmpi eq, %arg1, %c1_i32 : i32
    %8 = arith.extui %7 : i1 to i32
    %c0_i32_9 = arith.constant 0 : i32
    %9 = arith.cmpi ne, %8, %c0_i32_9 : i32
    scf.if %9 {
      %c0_10 = arith.constant 0 : index
      %c0_11 = arith.constant 0 : index
      %c0_12 = arith.constant 0 : index
      %10 = vector.load %arg8[%c0_10, %c0_11, %c0_12] : memref<8x4x128xf32, #tpu.memory_space<vmem>>, vector<8x4x128xf32>
      %cst = arith.constant dense<0.000000e+00> : vector<8x4xf32>
      %11 = vector.multi_reduction <add>, %10, %cst [2] : vector<8x4x128xf32> to vector<8x4xf32>
      %c0_13 = arith.constant 0 : index
      %c0_14 = arith.constant 0 : index
      %12 = vector.load %arg3[%c0_13, %c0_14] : memref<4x32xf32, #tpu.memory_space<vmem>>, vector<4x32xf32>
      %cst_15 = arith.constant dense<0.000000e+00> : vector<8x32xf32>
      %13 = tpu.matmul %11, %12, %cst_15 {dimension_numbers = #tpu.dot_dimension_numbers<[1], [0], [0], [1], [0, 0, 1, 1], [], []>} : vector<8x4xf32>, vector<4x32xf32>, vector<8x32xf32> -> vector<8x32xf32>
      %c0_16 = arith.constant 0 : index
      %c0_17 = arith.constant 0 : index
      %14 = vector.load %arg4[%c0_16, %c0_17] : memref<1x32xf32, #tpu.memory_space<vmem>>, vector<1x32xf32>
      %15 = vector.broadcast %14 : vector<1x32xf32> to vector<8x32xf32>
      %16 = arith.addf %13, %15 : vector<8x32xf32>
      %cst_18 = arith.constant 0.000000e+00 : f32
      %17 = vector.broadcast %cst_18 : f32 to vector<8x32xf32>
      %18 = arith.maximumf %16, %17 : vector<8x32xf32>
      %c0_19 = arith.constant 0 : index
      %c0_20 = arith.constant 0 : index
      %19 = vector.load %arg5[%c0_19, %c0_20] : memref<32x128xf32, #tpu.memory_space<vmem>>, vector<32x128xf32>
      %cst_21 = arith.constant dense<0.000000e+00> : vector<8x128xf32>
      %20 = tpu.matmul %18, %19, %cst_21 {dimension_numbers = #tpu.dot_dimension_numbers<[1], [0], [0], [1], [0, 0, 1, 1], [], []>} : vector<8x32xf32>, vector<32x128xf32>, vector<8x128xf32> -> vector<8x128xf32>
      %c0_22 = arith.constant 0 : index
      %c0_23 = arith.constant 0 : index
      %21 = vector.load %arg6[%c0_22, %c0_23] : memref<1x128xf32, #tpu.memory_space<vmem>>, vector<1x128xf32>
      %22 = vector.broadcast %21 : vector<1x128xf32> to vector<8x128xf32>
      %23 = arith.addf %20, %22 : vector<8x128xf32>
      %c0_24 = arith.constant 0 : index
      %c0_25 = arith.constant 0 : index
      %24 = vector.load %arg7[%c0_24, %c0_25] : memref<8x128xf32, #tpu.memory_space<vmem>>, vector<8x128xf32>
      tpu.vector_store %arg7[%c0_24, %c0_25], %23 {strides = array<i32>} : memref<8x128xf32, #tpu.memory_space<vmem>>, vector<8x128xf32>,
    } else {
    }
    return
  }
  func.func @transform_0(%arg0: i32, %arg1: i32) -> (i32, i32, i32) {
    %c0_i32 = arith.constant 0 : i32
    %c0_i32_0 = arith.constant 0 : i32
    return %arg0, %c0_i32, %arg1 : i32, i32, i32
  }
  func.func @transform_1(%arg0: i32, %arg1: i32) -> (i32, i32) {
    %c0_i32 = arith.constant 0 : i32
    %c0_i32_0 = arith.constant 0 : i32
    %c0_i32_1 = arith.constant 0 : i32
    return %c0_i32, %c0_i32_0 : i32, i32
  }
  func.func @transform_2(%arg0: i32, %arg1: i32) -> (i32, i32) {
    %c0_i32 = arith.constant 0 : i32
    %c0_i32_0 = arith.constant 0 : i32
    %c0_i32_1 = arith.constant 0 : i32
    return %c0_i32, %c0_i32_0 : i32, i32
  }
  func.func @transform_3(%arg0: i32, %arg1: i32) -> (i32, i32) {
    %c0_i32 = arith.constant 0 : i32
    %c0_i32_0 = arith.constant 0 : i32
    %c0_i32_1 = arith.constant 0 : i32
    return %c0_i32, %c0_i32_0 : i32, i32
  }
  func.func @transform_4(%arg0: i32, %arg1: i32) -> (i32, i32) {
    %c0_i32 = arith.constant 0 : i32
    %c0_i32_0 = arith.constant 0 : i32
    %c0_i32_1 = arith.constant 0 : i32
    return %c0_i32, %c0_i32_0 : i32, i32
  }
  func.func @transform_5(%arg0: i32, %arg1: i32) -> (i32, i32) {
    %c0_i32 = arith.constant 0 : i32
    %c0_i32_0 = arith.constant 0 : i32
    return %arg0, %c0_i32 : i32, i32
  }
}

</mosaic_0001>

<llo_original>
// kernel: tpu_custom_call.1
$region0: #{tpu_custom_call.1}
  #allocation0 [shape = 'u32[]', space=smem, size = 0x4, offset = 0x4, fixed_abs, tag = 'smem constant byte address 0x4 - core index']
  #allocation1 [shape = 'u32[144,128]{1,0:T(1,128)}', space=vmem, size = 0x12000, scoped, tag = 'internal scratch']
  #allocation2 [shape = 'f32[8,4,128]{2,1,0:T(4,128)}', space=vmem, size = 0x4000, scoped, tag = 'scratch operand']
  %s0 = inlined_call_operand.hbm [shape: f32[8,4,256], index: 0, kind: input, shape index: {}]
  %s1 = inlined_call_operand.hbm [shape: f32[4,32], index: 1, kind: input, shape index: {}]
  %s2 = inlined_call_operand.hbm [shape: f32[1,32], index: 2, kind: input, shape index: {}]
  %s3 = inlined_call_operand.hbm [shape: f32[32,128], index: 3, kind: input, shape index: {}]
  %s4 = inlined_call_operand.hbm [shape: f32[1,128], index: 4, kind: input, shape index: {}]
  %s5 = inlined_call_operand.hbm [shape: f32[8,128], index: 5, kind: output, shape index: {}]
  %s6 = sld [smem:[#allocation0]]
  $region81: #{tpu_custom_call.1} parent=0
    _
  %s8 = ssub.s32 1, %s6
  %s9 = scalar_select 0, %s8, %s6
  $region1: #{tpu_custom_call.1} parent=0
    #allocation3 [shape = 'u8[32768]{0}', space=vmem, size = 0x8000, scoped, tag = 'input window, operand 0']
    #allocation4 [shape = 's32[2]{0}', space=sflag, size = 0x8, scoped, tag = 'scoped memory for tpu_custom_call.1']
    #allocation5 [shape = 's32[2]{0}', space=sflag, size = 0x8, scoped, tag = 'scoped memory for tpu_custom_call.1']
    #allocation6 [shape = 'u8[2048]{0}', space=vmem, size = 0x800, scoped, tag = 'input window, operand 1, single buffered']
    #allocation7 [shape = 's32[1]{0}', space=sflag, size = 0x4, scoped, tag = 'scoped memory for tpu_custom_call.1']
    #allocation8 [shape = 'u8[512]{0}', space=vmem, size = 0x400, scoped, tag = 'input window, operand 2, single buffered']
    #allocation9 [shape = 'u8[16384]{0}', space=vmem, size = 0x4000, scoped, tag = 'input window, operand 3, single buffered']
    #allocation10 [shape = 's32[1]{0}', space=sflag, size = 0x4, scoped, tag = 'scoped memory for tpu_custom_call.1']
    #allocation11 [shape = 'u8[512]{0}', space=vmem, size = 0x400, scoped, tag = 'input window, operand 4, single buffered']
    #allocation12 [shape = 'u8[4096]{0}', space=vmem, size = 0x1000, scoped, tag = 'output window, operand 0, single buffered']
    %10 = vsyncpa [#allocation4], 0
    %s11 = scalar_lea.sflag [#allocation4], 1
    %12 = vsyncpa %s11, 0
    %13 = vsyncpa [#allocation7], 0
    %14 = vsyncpa [#allocation10], 0
    %15 = vsyncpa [#allocation5], 0
    loop: start=0, step=1, limit=4
    $region2: #{tpu_custom_call.1} parent=1 // loop_pre_header
      _
    $region3: #{tpu_custom_call.1} parent=1 // loop_header
      %s17 = sphi 0, %s21
      %p18 = scmp.ge.s32.totalorder %s17, 4
      %s24 = sphi 0, %s36
      %s25 = sphi 0, %s32
      %s26 = sphi 0, %s24
      %s27 = sphi 0, %s25
      %s28 = sphi 0, %s26
      %s29 = sphi 0, %s27
      %s41 = sphi 0, %s43
      %s44 = sphi 0, %s41
      %s45 = sphi 0, %s44
      %s61 = sphi 0, %s45
      %s65 = sphi 0, %s65
      %s67 = sphi 0, %s65
      %s68 = sphi 0, %s67
      %s82 = sphi 0, %s68
      %s86 = sphi 0, %s86
      %s88 = sphi 0, %s86
      %s89 = sphi 0, %s88
      %s103 = sphi 0, %s89
      %s107 = sphi 0, %s107
      %s109 = sphi 0, %s107
      %s110 = sphi 0, %s109
      %s124 = sphi 0, %s110
      %s128 = sphi 0, %s128
      %s130 = sphi 0, %s128
      %s131 = sphi 0, %s130
      %s145 = sphi 0, %s131
      %s151 = sphi 0, %s153
      %s154 = sphi 0, %s151
      %s155 = sphi 0, %s154
      %s171 = sphi 0, %s155
    $region4: #{tpu_custom_call.1} parent=1 // loop_header_branch
      %20 = sbr.rel (%p18) target = $region8
    $region5: #{tpu_custom_call.1} parent=1 // loop_body
      %s22 = ssub.s32 %s17, 1
      %s23 = ssub.s32 %s17, 2
      %s30 = sadd.s32 1, %s25
      %p31 = scmp.ge.s32.totalorder %s30, 2
      %s32 = scalar_select %p31, 0, %s30
      %s33 = sadd.s32 1, %s24
      %s34 = scalar_select %p31, %s33, %s24
      %p35 = scmp.ge.s32.totalorder %s34, 1
      %s36 = scalar_select %p35, 0, %s34
      %s37 = ssub.s32 %s24, %s36
      %s38 = ssub.s32 %s25, %s32
      %s39 = sor.u32 %s37, %s38
      %p40 = scmp.eq.s32.totalorder %s39, 0
      %s42 = sadd.s32 %s41, 1
      %s43 = scalar_select %p40, %s41, %s42
      %p46 = pneg %p40
      %p47 = scmp.eq.s32.totalorder %s17, 1
      %p48 = por %p46, %p47
      %p49 = scmp.ne.s32.totalorder %s41, %s44
      %p50 = scmp.eq.s32.totalorder %s17, 0
      %p51 = por %p49, %p50
      %p52 = scmp.ne.s32.totalorder %s41, %s44
      %p53 = scmp.eq.s32.totalorder %s22, 1
      %p54 = por %p52, %p53
      %p55 = scmp.ne.s32.totalorder %s44, %s45
      %p56 = scmp.eq.s32.totalorder %s22, 0
      %p57 = por %p55, %p56
      %p58 = scmp.ne.s32.totalorder %s44, %s45
      %p59 = scmp.eq.s32.totalorder %s23, 1
      %p60 = por %p58, %p59
      %p62 = scmp.ne.s32.totalorder %s45, %s61
      %p63 = scmp.eq.s32.totalorder %s23, 0
      %p64 = por %p62, %p63
      %s66 = sadd.s32 %s65, 1
      %p69 = scmp.eq.s32.totalorder %s17, 1
      %p70 = scmp.ne.s32.totalorder %s65, %s67
      %p71 = scmp.eq.s32.totalorder %s17, 0
      %p72 = por %p70, %p71
      %p73 = scmp.ne.s32.totalorder %s65, %s67
      %p74 = scmp.eq.s32.totalorder %s22, 1
      %p75 = por %p73, %p74
      %p76 = scmp.ne.s32.totalorder %s67, %s68
      %p77 = scmp.eq.s32.totalorder %s22, 0
      %p78 = por %p76, %p77
      %p79 = scmp.ne.s32.totalorder %s67, %s68
      %p80 = scmp.eq.s32.totalorder %s23, 1
      %p81 = por %p79, %p80
      %p83 = scmp.ne.s32.totalorder %s68, %s82
      %p84 = scmp.eq.s32.totalorder %s23, 0
      %p85 = por %p83, %p84
      %s87 = sadd.s32 %s86, 1
      %p90 = scmp.eq.s32.totalorder %s17, 1
      %p91 = scmp.ne.s32.totalorder %s86, %s88
      %p92 = scmp.eq.s32.totalorder %s17, 0
      %p93 = por %p91, %p92
      %p94 = scmp.ne.s32.totalorder %s86, %s88
      %p95 = scmp.eq.s32.totalorder %s22, 1
      %p96 = por %p94, %p95
      %p97 = scmp.ne.s32.totalorder %s88, %s89
      %p98 = scmp.eq.s32.totalorder %s22, 0
      %p99 = por %p97, %p98
      %p100 = scmp.ne.s32.totalorder %s88, %s89
      %p101 = scmp.eq.s32.totalorder %s23, 1
      %p102 = por %p100, %p101
      %p104 = scmp.ne.s32.totalorder %s89, %s103
      %p105 = scmp.eq.s32.totalorder %s23, 0
      %p106 = por %p104, %p105
      %s108 = sadd.s32 %s107, 1
      %p111 = scmp.eq.s32.totalorder %s17, 1
      %p112 = scmp.ne.s32.totalorder %s107, %s109
      %p113 = scmp.eq.s32.totalorder %s17, 0
      %p114 = por %p112, %p113
      %p115 = scmp.ne.s32.totalorder %s107, %s109
      %p116 = scmp.eq.s32.totalorder %s22, 1
      %p117 = por %p115, %p116
      %p118 = scmp.ne.s32.totalorder %s109, %s110
      %p119 = scmp.eq.s32.totalorder %s22, 0
      %p120 = por %p118, %p119
      %p121 = scmp.ne.s32.totalorder %s109, %s110
      %p122 = scmp.eq.s32.totalorder %s23, 1
      %p123 = por %p121, %p122
      %p125 = scmp.ne.s32.totalorder %s110, %s124
      %p126 = scmp.eq.s32.totalorder %s23, 0
      %p127 = por %p125, %p126
      %s129 = sadd.s32 %s128, 1
      %p132 = scmp.eq.s32.totalorder %s17, 1
      %p133 = scmp.ne.s32.totalorder %s128, %s130
      %p134 = scmp.eq.s32.totalorder %s17, 0
      %p135 = por %p133, %p134
      %p136 = scmp.ne.s32.totalorder %s128, %s130
      %p137 = scmp.eq.s32.totalorder %s22, 1
      %p138 = por %p136, %p137
      %p139 = scmp.ne.s32.totalorder %s130, %s131
      %p140 = scmp.eq.s32.totalorder %s22, 0
      %p141 = por %p139, %p140
      %p142 = scmp.ne.s32.totalorder %s130, %s131
      %p143 = scmp.eq.s32.totalorder %s23, 1
      %p144 = por %p142, %p143
      %p146 = scmp.ne.s32.totalorder %s131, %s145
      %p147 = scmp.eq.s32.totalorder %s23, 0
      %p148 = por %p146, %p147
      %s149 = ssub.s32 %s24, %s36
      %p150 = scmp.eq.s32.totalorder %s149, 0
      %s152 = sadd.s32 %s151, 1
      %s153 = scalar_select %p150, %s151, %s152
      %p156 = pneg %p150
      %p157 = scmp.eq.s32.totalorder %s17, 1
      %p158 = por %p156, %p157
      %p159 = scmp.ne.s32.totalorder %s151, %s154
      %p160 = scmp.eq.s32.totalorder %s17, 0
      %p161 = por %p159, %p160
      %p162 = scmp.ne.s32.totalorder %s151, %s154
      %p163 = scmp.eq.s32.totalorder %s22, 1
      %p164 = por %p162, %p163
      %p165 = scmp.ne.s32.totalorder %s154, %s155
      %p166 = scmp.eq.s32.totalorder %s22, 0
      %p167 = por %p165, %p166
      %p168 = scmp.ne.s32.totalorder %s154, %s155
      %p169 = scmp.eq.s32.totalorder %s23, 1
      %p170 = por %p168, %p169
      %p172 = scmp.ne.s32.totalorder %s155, %s171
      %p173 = scmp.eq.s32.totalorder %s23, 0
      %p174 = por %p172, %p173
      %p175 = scmp.le.s32.totalorder 1, %s17
      %p176 = scmp.lt.s32.totalorder %s17, 3
      %p177 = pnand %p175, %p176
      %p178 = pneg %p177
      // Predicated region
      $region9: #{tpu_custom_call.1} parent=5 // pred_check
        _
      $region10: #{tpu_custom_call.1} parent=5 // pred_check_branch
        %180 = sbr.rel (%p177) target = $region12
      $region11: #{tpu_custom_call.1} parent=5 // pred_region
        %s181 = ssub.s32 %s17, 1
        // Predicated region
        $region13: #{tpu_custom_call.1} parent=11 // pred_check
          %p182 = pneg %p78
        $region14: #{tpu_custom_call.1} parent=11 // pred_check_branch
          %184 = sbr.rel (%p182) target = $region16
        $region15: #{tpu_custom_call.1} parent=11 // pred_region
          %s186 = ssub.s32 64, 64
          %187 = vsyncadd [#allocation7], %s186
          %s189 = sshll.u32 [#allocation6], 4
          %s190 = int_to_ptr.vmem [resolvable:$true] %s189
          %192 = dma.hbm_to_vmem [thread:$0]  %s1, 64, %s190, [#allocation7]
        $region16: #{tpu_custom_call.1} parent=11 // pred_fallthru
          _
        // Predicated region
        $region17: #{tpu_custom_call.1} parent=11 // pred_check
          %p193 = pneg %p99
        $region18: #{tpu_custom_call.1} parent=11 // pred_check_branch
          %195 = sbr.rel (%p193) target = $region20
        $region19: #{tpu_custom_call.1} parent=11 // pred_region
          %s197 = ssub.s32 16, 16
          %198 = vsyncadd [#allocation7], %s197
          %s200 = sshll.u32 [#allocation8], 4
          %s201 = int_to_ptr.vmem [resolvable:$true] %s200
          %203 = dma.hbm_to_vmem [thread:$0]  %s2, 16, %s201, [#allocation7]
        $region20: #{tpu_custom_call.1} parent=11 // pred_fallthru
          _
        // Predicated region
        $region21: #{tpu_custom_call.1} parent=11 // pred_check
          %p204 = pneg %p120
        $region22: #{tpu_custom_call.1} parent=11 // pred_check_branch
          %206 = sbr.rel (%p204) target = $region24
        $region23: #{tpu_custom_call.1} parent=11 // pred_region
          %s208 = ssub.s32 512, 512
          %209 = vsyncadd [#allocation10], %s208
          %s210 = sshll.u32 [#allocation9], 4
          %s211 = int_to_ptr.vmem [resolvable:$true] %s210
          %216 = dma.hbm_to_vmem [thread:$0]  %s3, 512, %s211, [#allocation10], 128, 128, 8
        $region24: #{tpu_custom_call.1} parent=11 // pred_fallthru
          _
        // Predicated region
        $region25: #{tpu_custom_call.1} parent=11 // pred_check
          %p217 = pneg %p141
        $region26: #{tpu_custom_call.1} parent=11 // pred_check_branch
          %219 = sbr.rel (%p217) target = $region28
        $region27: #{tpu_custom_call.1} parent=11 // pred_region
          %s221 = ssub.s32 16, 16
          %222 = vsyncadd [#allocation10], %s221
          %s224 = sshll.u32 [#allocation11], 4
          %s225 = int_to_ptr.vmem [resolvable:$true] %s224
          %227 = dma.hbm_to_vmem [thread:$0]  %s4, 16, %s225, [#allocation10]
        $region28: #{tpu_custom_call.1} parent=11 // pred_fallthru
          _
      $region12: #{tpu_custom_call.1} parent=5 // pred_fallthru
        _
      %p228 = scmp.lt.s32.totalorder %s17, 2
      // Predicated region
      $region29: #{tpu_custom_call.1} parent=5 // pred_check
        %p229 = pneg %p228
      $region30: #{tpu_custom_call.1} parent=5 // pred_check_branch
        %231 = sbr.rel (%p229) target = $region32
      $region31: #{tpu_custom_call.1} parent=5 // pred_region
        // Predicated region
        $region33: #{tpu_custom_call.1} parent=31 // pred_check
          %p232 = pneg %p51
        $region34: #{tpu_custom_call.1} parent=31 // pred_check_branch
          %234 = sbr.rel (%p232) target = $region36
        $region35: #{tpu_custom_call.1} parent=31 // pred_region
          %s235 = sand.u32 %s41, 1
          %s236 = scalar_lea.sflag [#allocation4], %s235
          %s237 = sand.u32 %s41, 1
          %s238 = smul.addr %s237, 32
          %s239 = scalar_lea.vmem [#allocation3], %s238
          %s240 = smul.u32 8, %s24
          %s242 = ssub.s32 512, 512
          %243 = vsyncadd %s236, %s242
          %s244 = smul.addr %s240, 2
          %s245 = sadd.s32 %s25, %s244
          %s246 = smul.addr %s245, 64
          %s247 = scalar_lea.hbm %s0, %s246
          %s248 = sshll.u32 %s239, 4
          %s249 = int_to_ptr.vmem [resolvable:$true] %s248
          %254 = dma.hbm_to_vmem [thread:$0]  %s247, 512, %s249, %s236, 128, 64, 4
        $region36: #{tpu_custom_call.1} parent=31 // pred_fallthru
          _
      $region32: #{tpu_custom_call.1} parent=5 // pred_fallthru
        _
      %p255 = scmp.le.s32.totalorder 1, %s17
      %p256 = scmp.lt.s32.totalorder %s17, 3
      %p257 = pnand %p255, %p256
      %p258 = pneg %p257
      // Predicated region
      $region37: #{tpu_custom_call.1} parent=5 // pred_check
        _
      $region38: #{tpu_custom_call.1} parent=5 // pred_check_branch
        %260 = sbr.rel (%p257) target = $region40
      $region39: #{tpu_custom_call.1} parent=5 // pred_region
        %s261 = ssub.s32 %s17, 1
        %s262 = sand.u32 %s44, 1
        %s263 = scalar_lea.sflag [#allocation4], %s262
        %s264 = sand.u32 %s44, 1
        %s265 = smul.addr %s264, 32
        %s266 = scalar_lea.vmem [#allocation3], %s265
        // Predicated region
        $region41: #{tpu_custom_call.1} parent=39 // pred_check
          %p267 = pneg %p57
        $region42: #{tpu_custom_call.1} parent=39 // pred_check_branch
          %269 = sbr.rel (%p267) target = $region44
        $region43: #{tpu_custom_call.1} parent=39 // pred_region
          %270 = dma.done %s263, 512
        $region44: #{tpu_custom_call.1} parent=39 // pred_fallthru
          _
        // Predicated region
        $region45: #{tpu_custom_call.1} parent=39 // pred_check
          %p271 = pneg %p78
        $region46: #{tpu_custom_call.1} parent=39 // pred_check_branch
          %273 = sbr.rel (%p271) target = $region48
        $region47: #{tpu_custom_call.1} parent=39 // pred_region
          %274 = dma.done [#allocation7], 64
        $region48: #{tpu_custom_call.1} parent=39 // pred_fallthru
          _
        // Predicated region
        $region49: #{tpu_custom_call.1} parent=39 // pred_check
          %p275 = pneg %p99
        $region50: #{tpu_custom_call.1} parent=39 // pred_check_branch
          %277 = sbr.rel (%p275) target = $region52
        $region51: #{tpu_custom_call.1} parent=39 // pred_region
          %278 = dma.done [#allocation7], 16
        $region52: #{tpu_custom_call.1} parent=39 // pred_fallthru
          _
        // Predicated region
        $region53: #{tpu_custom_call.1} parent=39 // pred_check
          %p279 = pneg %p120
        $region54: #{tpu_custom_call.1} parent=39 // pred_check_branch
          %281 = sbr.rel (%p279) target = $region56
        $region55: #{tpu_custom_call.1} parent=39 // pred_region
          %282 = dma.done [#allocation10], 512
        $region56: #{tpu_custom_call.1} parent=39 // pred_fallthru
          _
        // Predicated region
        $region57: #{tpu_custom_call.1} parent=39 // pred_check
          %p283 = pneg %p141
        $region58: #{tpu_custom_call.1} parent=39 // pred_check_branch
          %285 = sbr.rel (%p283) target = $region60
        $region59: #{tpu_custom_call.1} parent=39 // pred_region
          %286 = dma.done [#allocation10], 16
        $region60: #{tpu_custom_call.1} parent=39 // pred_fallthru
          _
        %s287 = sand.u32 %s44, 1
        %s288 = scalar_lea.sflag [#allocation4], %s287
        %s289 = sand.u32 %s44, 1
        %s290 = smul.addr %s289, 32
        %s291 = scalar_lea.vmem [#allocation3], %s290
        %p292 = pneg %p57
        %p293 = pneg %p54
        %p294 = pneg %p78
        %p295 = pneg %p75
        %p296 = pneg %p99
        %p297 = pneg %p96
        %p298 = pneg %p120
        %p299 = pneg %p117
        %p300 = pneg %p141
        %p301 = pneg %p138
        %p302 = pneg %p167
        %p303 = pneg %p164
        %s304 = smul.u32 8, %s26
        %p305 = scmp.eq.s32.totalorder %s27, 0
        // Predicated region
        $region61: #{tpu_custom_call.1} parent=39 // pred_check
          %p306 = pneg %p305
        $region62: #{tpu_custom_call.1} parent=39 // pred_check_branch
          %308 = sbr.rel (%p306) target = $region64
        $region63: #{tpu_custom_call.1} parent=39 // pred_region
          %309 = vst [vmem:[#allocation2] sm:$0xf] 0.0
          %310 = vst [vmem:[#allocation2 + $0x4] sm:$0xf] 0.0
          %311 = vst [vmem:[#allocation2 + $0x8] sm:$0xf] 0.0
          %312 = vst [vmem:[#allocation2 + $0xc] sm:$0xf] 0.0
          %313 = vst [vmem:[#allocation2 + $0x10] sm:$0xf] 0.0
          %314 = vst [vmem:[#allocation2 + $0x14] sm:$0xf] 0.0
          %315 = vst [vmem:[#allocation2 + $0x18] sm:$0xf] 0.0
          %316 = vst [vmem:[#allocation2 + $0x1c] sm:$0xf] 0.0
        $region64: #{tpu_custom_call.1} parent=39 // pred_fallthru
          _
        %v317 = vld [vmem:[#allocation2] sm:$0xf]
        %v318 = vld [vmem:[#allocation2 + $0x4] sm:$0xf]
        %v319 = vld [vmem:[#allocation2 + $0x8] sm:$0xf]
        %v320 = vld [vmem:[#allocation2 + $0xc] sm:$0xf]
        %v321 = vld [vmem:[#allocation2 + $0x10] sm:$0xf]
        %v322 = vld [vmem:[#allocation2 + $0x14] sm:$0xf]
        %v323 = vld [vmem:[#allocation2 + $0x18] sm:$0xf]
        %v324 = vld [vmem:[#allocation2 + $0x1c] sm:$0xf]
        %v325 = vld [vmem:[%s266] sm:$0xf]
        %v326 = vld [vmem:[%s266 + $0x4] sm:$0xf]
        %v327 = vld [vmem:[%s266 + $0x8] sm:$0xf]
        %v328 = vld [vmem:[%s266 + $0xc] sm:$0xf]
        %v329 = vld [vmem:[%s266 + $0x10] sm:$0xf]
        %v330 = vld [vmem:[%s266 + $0x14] sm:$0xf]
        %v331 = vld [vmem:[%s266 + $0x18] sm:$0xf]
        %v332 = vld [vmem:[%s266 + $0x1c] sm:$0xf]
        %v333 = vadd.f32 %v317, %v325
        %v334 = vadd.f32 %v318, %v326
        %v335 = vadd.f32 %v319, %v327
        %v336 = vadd.f32 %v320, %v328
        %v337 = vadd.f32 %v321, %v329
        %v338 = vadd.f32 %v322, %v330
        %v339 = vadd.f32 %v323, %v331
        %v340 = vadd.f32 %v324, %v332
        %341 = vst [vmem:[#allocation2] sm:$0xf] %v333
        %342 = vst [vmem:[#allocation2 + $0x4] sm:$0xf] %v334
        %343 = vst [vmem:[#allocation2 + $0x8] sm:$0xf] %v335
        %344 = vst [vmem:[#allocation2 + $0xc] sm:$0xf] %v336
        %345 = vst [vmem:[#allocation2 + $0x10] sm:$0xf] %v337
        %346 = vst [vmem:[#allocation2 + $0x14] sm:$0xf] %v338
        %347 = vst [vmem:[#allocation2 + $0x18] sm:$0xf] %v339
        %348 = vst [vmem:[#allocation2 + $0x1c] sm:$0xf] %v340
        %p349 = scmp.eq.s32.totalorder %s27, 1
        // Predicated region
        $region65: #{tpu_custom_call.1} parent=39 // pred_check
          %p350 = pneg %p349
        $region66: #{tpu_custom_call.1} parent=39 // pred_check_branch
          %352 = sbr.rel (%p350) target = $region68
        $region67: #{tpu_custom_call.1} parent=39 // pred_region
          %v353 = vld [vmem:[#allocation2] sm:$0xf]
          %v354 = vld [vmem:[#allocation2 + $0x4] sm:$0xf]
          %v355 = vld [vmem:[#allocation2 + $0x8] sm:$0xf]
          %v356 = vld [vmem:[#allocation2 + $0xc] sm:$0xf]
          %v357 = vld [vmem:[#allocation2 + $0x10] sm:$0xf]
          %v358 = vld [vmem:[#allocation2 + $0x14] sm:$0xf]
          %v359 = vld [vmem:[#allocation2 + $0x18] sm:$0xf]
          %v360 = vld [vmem:[#allocation2 + $0x1c] sm:$0xf]
          %vm361 = vcmask 1043456
          %v362 = vsel %vm361, %v353, 0.0
          %363 = vadd.xlane.f32.xlu0 %v362
          %v364 = vpop.xlane.xlu0 %363
          %v365 = vsel %vm361, %v354, 0.0
          %366 = vadd.xlane.f32.xlu0 %v365
          %v367 = vpop.xlane.xlu0 %366
          %v368 = vsel %vm361, %v355, 0.0
          %369 = vadd.xlane.f32.xlu0 %v368
          %v370 = vpop.xlane.xlu0 %369
          %v371 = vsel %vm361, %v356, 0.0
          %372 = vadd.xlane.f32.xlu0 %v371
          %v373 = vpop.xlane.xlu0 %372
          %v374 = vsel %vm361, %v357, 0.0
          %375 = vadd.xlane.f32.xlu0 %v374
          %v376 = vpop.xlane.xlu0 %375
          %v377 = vsel %vm361, %v358, 0.0
          %378 = vadd.xlane.f32.xlu0 %v377
          %v379 = vpop.xlane.xlu0 %378
          %v380 = vsel %vm361, %v359, 0.0
          %381 = vadd.xlane.f32.xlu0 %v380
          %v382 = vpop.xlane.xlu0 %381
          %v383 = vsel %vm361, %v360, 0.0
          %384 = vadd.xlane.f32.xlu0 %v383
          %v385 = vpop.xlane.xlu0 %384
          %v386 = vld [vmem:[#allocation6] sm:$0xf]
          %v387 = vld [vmem:[#allocation8] sm:$0x1]
          %v389 = vlaneseq
          %v390 = vshrl.u32 %v389, 7
          %v391 = vsub.s32 0, %v390
          %v392 = vrot.slane %v387, %v391
          %v402 = vlaneseq
          %v403 = vand.u32 %v402, 127
          %v404 = vlaneseq
          %v405 = vshrl.u32 %v404, 7
          %v406 = vsub.s32 %v403, %v405
          %v407 = vrot.slane %v364, %v406
          %v408 = vlaneseq
          %v409 = vshrl.u32 %v408, 7
          %v410 = vsub.s32 %v403, %v409
          %v411 = vrot.slane %v367, %v410
          %v412 = vlaneseq
          %v413 = vshrl.u32 %v412, 7
          %v414 = vsub.s32 %v403, %v413
          %v415 = vrot.slane %v370, %v414
          %v416 = vlaneseq
          %v417 = vshrl.u32 %v416, 7
          %v418 = vsub.s32 %v403, %v417
          %v419 = vrot.slane %v373, %v418
          %v420 = vlaneseq
          %v421 = vshrl.u32 %v420, 7
          %v422 = vsub.s32 %v403, %v421
          %v423 = vrot.slane %v376, %v422
          %v424 = vlaneseq
          %v425 = vshrl.u32 %v424, 7
          %v426 = vsub.s32 %v403, %v425
          %v427 = vrot.slane %v379, %v426
          %v428 = vlaneseq
          %v429 = vshrl.u32 %v428, 7
          %v430 = vsub.s32 %v403, %v429
          %v431 = vrot.slane %v382, %v430
          %v432 = vlaneseq
          %v433 = vshrl.u32 %v432, 7
          %v434 = vsub.s32 %v403, %v433
          %v435 = vrot.slane %v385, %v434
          %vm436 = vcmask 1041409
          %v437 = vsel %vm436, %v411, %v407
          %vm438 = vcmask 1042434
          %v439 = vsel %vm438, %v415, %v437
          %vm440 = vcmask 1043459
          %v441 = vsel %vm440, %v419, %v439
          %vm442 = vcmask 1044484
          %v443 = vsel %vm442, %v423, %v441
          %vm444 = vcmask 1045509
          %v445 = vsel %vm444, %v427, %v443
          %vm446 = vcmask 1046534
          %v447 = vsel %vm446, %v431, %v445
          %vm448 = vcmask 1047559
          %v449 = vsel %vm448, %v435, %v447
          %vm450 = vcmask 31744
          %v451 = vsel %vm450, %v449, 0
          %v454 = vsel %vm361, %v386, 0
          %456 = vmatprep.subr.mxu0 0.0
          %457 = vmatpush1.msra.mxu0 %v454
          %458 = vmatprep.subr.mxu0 0.0
          %459 = vmatpush1.msra.mxu0 0.0
          %460 = vmatprep.subr.mxu0 0.0
          %461 = vmatpush1.msra.mxu0 0.0
          %462 = vmatprep.subr.mxu0 0.0
          %463 = vmatpush1.msra.mxu0 0.0
          %464 = vmatprep.subr.mxu0 0.0
          %465 = vmatpush1.msra.mxu0 0.0
          %466 = vmatprep.subr.mxu0 0.0
          %467 = vmatpush1.msra.mxu0 0.0
          %468 = vmatprep.subr.mxu0 0.0
          %469 = vmatpush1.msra.mxu0 0.0
          %470 = vmatprep.subr.mxu0 0.0
          %471 = vmatpush1.msra.mxu0 0.0
          %472 = vmatprep.subr.mxu0 0.0
          %473 = vmatpush1.msra.mxu0 0.0
          %474 = vmatprep.subr.mxu0 0.0
          %475 = vmatpush1.msra.mxu0 0.0
          %476 = vmatprep.subr.mxu0 0.0
          %477 = vmatpush1.msra.mxu0 0.0
          %478 = vmatprep.subr.mxu0 0.0
          %479 = vmatpush1.msra.mxu0 0.0
          %480 = vmatprep.subr.mxu0 0.0
          %481 = vmatpush1.msra.mxu0 0.0
          %482 = vmatprep.subr.mxu0 0.0
          %483 = vmatpush1.msra.mxu0 0.0
          %484 = vmatprep.subr.mxu0 0.0
          %485 = vmatpush1.msra.mxu0 0.0
          %486 = vmatprep.subr.mxu0 0.0
          %487 = vmatpush1.msra.mxu0 0.0
          %488 = vmatprep.subr.mxu0 0.0
          %489 = vmatpush1.msra.mxu0 0.0
          %490 = vmatprep.subr.mxu0 0.0
          %491 = vmatpush1.msra.mxu0 0.0
          %492 = vmatprep.subr.mxu0 0.0
          %493 = vmatpush1.msra.mxu0 0.0
          %494 = vmatprep.subr.mxu0 0.0
          %495 = vmatpush1.msra.mxu0 0.0
          %496 = vmatprep.subr.mxu0 0.0
          %497 = vmatpush1.msra.mxu0 0.0
          %498 = vmatprep.subr.mxu0 0.0
          %499 = vmatpush1.msra.mxu0 0.0
          %500 = vmatprep.subr.mxu0 0.0
          %501 = vmatpush1.msra.mxu0 0.0
          %502 = vmatprep.subr.mxu0 0.0
          %503 = vmatpush1.msra.mxu0 0.0
          %504 = vmatprep.subr.mxu0 0.0
          %505 = vmatpush1.msra.mxu0 0.0
          %506 = vmatprep.subr.mxu0 0.0
          %507 = vmatpush1.msra.mxu0 0.0
          %508 = vmatprep.subr.mxu0 0.0
          %509 = vmatpush1.msra.mxu0 0.0
          %510 = vmatprep.subr.mxu0 0.0
          %511 = vmatpush1.msra.mxu0 0.0
          %512 = vmatprep.subr.mxu0 0.0
          %513 = vmatpush1.msra.mxu0 0.0
          %514 = vmatprep.subr.mxu0 0.0
          %515 = vmatpush1.msra.mxu0 0.0
          %516 = vmatprep.subr.mxu0 0.0
          %517 = vmatpush1.msra.mxu0 0.0
          %518 = vmatprep.subr.mxu0 0.0
          %519 = vmatpush1.msra.mxu0 0.0
          %520 = vmatprep.mubr.f32.mxu0 0.0
          %521 = vmatmul.mubr.f32.gmra.mrb[0].mxu0 %v451
          %v522 = vpop.f32.mrb[0].mxu0
          %v523 = vadd.f32 %v392, %v522
          %v524 = vpop.f32.mrb[0].mxu0
          %525 = vdwg.mxu0
          %v526 = vmax.f32 %v523, 0.0
          %v527 = vld [vmem:[#allocation9] sm:$0xff]
          %v528 = vld [vmem:[#allocation9 + $0x8] sm:$0xff]
          %v529 = vld [vmem:[#allocation9 + $0x10] sm:$0xff]
          %v530 = vld [vmem:[#allocation9 + $0x18] sm:$0xff]
          %v531 = vld [vmem:[#allocation11] sm:$0x1]
          %v533 = vlaneseq
          %v534 = vshrl.u32 %v533, 7
          %v535 = vsub.s32 0, %v534
          %v536 = vrot.slane %v531, %v535
          %vm538 = vcmask 261120
          %v540 = vsel %vm538, %v526, 0
          %542 = vmatprep.subr.mxu0 0.0
          %543 = vmatpush1.msra.mxu0 %v527
          %544 = vmatprep.subr.mxu0 0.0
          %545 = vmatpush1.msra.mxu0 %v528
          %546 = vmatprep.subr.mxu0 0.0
          %547 = vmatpush1.msra.mxu0 %v529
          %548 = vmatprep.subr.mxu0 0.0
          %549 = vmatpush1.msra.mxu0 %v530
          %550 = vmatprep.subr.mxu0 0.0
          %551 = vmatpush1.msra.mxu0 0.0
          %552 = vmatprep.subr.mxu0 0.0
          %553 = vmatpush1.msra.mxu0 0.0
          %554 = vmatprep.subr.mxu0 0.0
          %555 = vmatpush1.msra.mxu0 0.0
          %556 = vmatprep.subr.mxu0 0.0
          %557 = vmatpush1.msra.mxu0 0.0
          %558 = vmatprep.subr.mxu0 0.0
          %559 = vmatpush1.msra.mxu0 0.0
          %560 = vmatprep.subr.mxu0 0.0
          %561 = vmatpush1.msra.mxu0 0.0
          %562 = vmatprep.subr.mxu0 0.0
          %563 = vmatpush1.msra.mxu0 0.0
          %564 = vmatprep.subr.mxu0 0.0
          %565 = vmatpush1.msra.mxu0 0.0
          %566 = vmatprep.subr.mxu0 0.0
          %567 = vmatpush1.msra.mxu0 0.0
          %568 = vmatprep.subr.mxu0 0.0
          %569 = vmatpush1.msra.mxu0 0.0
          %570 = vmatprep.subr.mxu0 0.0
          %571 = vmatpush1.msra.mxu0 0.0
          %572 = vmatprep.subr.mxu0 0.0
          %573 = vmatpush1.msra.mxu0 0.0
          %574 = vmatprep.subr.mxu0 0.0
          %575 = vmatpush1.msra.mxu0 0.0
          %576 = vmatprep.subr.mxu0 0.0
          %577 = vmatpush1.msra.mxu0 0.0
          %578 = vmatprep.subr.mxu0 0.0
          %579 = vmatpush1.msra.mxu0 0.0
          %580 = vmatprep.subr.mxu0 0.0
          %581 = vmatpush1.msra.mxu0 0.0
          %582 = vmatprep.subr.mxu0 0.0
          %583 = vmatpush1.msra.mxu0 0.0
          %584 = vmatprep.subr.mxu0 0.0
          %585 = vmatpush1.msra.mxu0 0.0
          %586 = vmatprep.subr.mxu0 0.0
          %587 = vmatpush1.msra.mxu0 0.0
          %588 = vmatprep.subr.mxu0 0.0
          %589 = vmatpush1.msra.mxu0 0.0
          %590 = vmatprep.subr.mxu0 0.0
          %591 = vmatpush1.msra.mxu0 0.0
          %592 = vmatprep.subr.mxu0 0.0
          %593 = vmatpush1.msra.mxu0 0.0
          %594 = vmatprep.subr.mxu0 0.0
          %595 = vmatpush1.msra.mxu0 0.0
          %596 = vmatprep.subr.mxu0 0.0
          %597 = vmatpush1.msra.mxu0 0.0
          %598 = vmatprep.subr.mxu0 0.0
          %599 = vmatpush1.msra.mxu0 0.0
          %600 = vmatprep.subr.mxu0 0.0
          %601 = vmatpush1.msra.mxu0 0.0
          %602 = vmatprep.subr.mxu0 0.0
          %603 = vmatpush1.msra.mxu0 0.0
          %604 = vmatprep.subr.mxu0 0.0
          %605 = vmatpush1.msra.mxu0 0.0
          %606 = vmatprep.mubr.f32.mxu0 0.0
          %607 = vmatmul.mubr.f32.gmra.mrb[0].mxu0 %v540
          %v608 = vpop.f32.mrb[0].mxu0
          %v609 = vadd.f32 %v536, %v608
          %v610 = vpop.f32.mrb[0].mxu0
          %611 = vdwg.mxu0
          %612 = vst [vmem:[#allocation12] sm:$0xff] %v609
        $region68: #{tpu_custom_call.1} parent=39 // pred_fallthru
          _
        // Predicated region
        $region69: #{tpu_custom_call.1} parent=39 // pred_check
          %p613 = pneg %p164
        $region70: #{tpu_custom_call.1} parent=39 // pred_check_branch
          %615 = sbr.rel (%p613) target = $region72
        $region71: #{tpu_custom_call.1} parent=39 // pred_region
          %s617 = ssub.s32 128, 128
          %618 = vsyncadd [#allocation5], %s617
          %s619 = smul.addr %s26, 128
          %s620 = scalar_lea.hbm %s5, %s619
          %s622 = sshll.u32 [#allocation12], 4
          %s623 = int_to_ptr.vmem [resolvable:$true] %s622
          %625 = dma.vmem_to_hbm [thread:$0]  %s623, 128, %s620, [#allocation5]
        $region72: #{tpu_custom_call.1} parent=39 // pred_fallthru
          _
        // Predicated region
        $region73: #{tpu_custom_call.1} parent=39 // pred_check
          %p626 = pneg %p164
        $region74: #{tpu_custom_call.1} parent=39 // pred_check_branch
          %628 = sbr.rel (%p626) target = $region76
        $region75: #{tpu_custom_call.1} parent=39 // pred_region
          %629 = dma.done [#allocation5], 128
        $region76: #{tpu_custom_call.1} parent=39 // pred_fallthru
          _
      $region40: #{tpu_custom_call.1} parent=5 // pred_fallthru
        _
      %p630 = scmp.le.s32.totalorder 2, %s17
      // Predicated region
      $region77: #{tpu_custom_call.1} parent=5 // pred_check
        %p631 = pneg %p630
      $region78: #{tpu_custom_call.1} parent=5 // pred_check_branch
        %633 = sbr.rel (%p631) target = $region80
      $region79: #{tpu_custom_call.1} parent=5 // pred_region
        %s634 = ssub.s32 %s17, 2
      $region80: #{tpu_custom_call.1} parent=5 // pred_fallthru
        _
    $region6: #{tpu_custom_call.1} parent=1 // loop_footer
      %s21 = sadd.s32 1, %s17
    $region7: #{tpu_custom_call.1} parent=1 // loop_footer_branch
      %16 = sbr.rel target = $region3
    $region8: #{tpu_custom_call.1} parent=1 // loop_exit
      _
    %635 = vsyncpa [#allocation4], 1
    %s636 = scalar_lea.sflag [#allocation4], 1
    %637 = vsyncpa %s636, 1
    %638 = vsyncpa [#allocation7], 1
    %639 = vsyncpa [#allocation10], 1
    %640 = vsyncpa [#allocation5], 1
    %s641 = scalar_lea.sflag [#allocation5], 1
    %642 = vsyncpa %s641, 1

// kernel: tpu_custom_call.1
$region0: #{tpu_custom_call.1}
  #allocation0 [shape = 'u32[]', space=smem, size = 0x4, offset = 0x4, fixed_abs, tag = 'smem constant byte address 0x4 - core index']
  #allocation1 [shape = 'u32[144,128]{1,0:T(1,128)}', space=vmem, size = 0x12000, scoped, tag = 'internal scratch']
  #allocation2 [shape = 'f32[8,4,128]{2,1,0:T(4,128)}', space=vmem, size = 0x4000, scoped, tag = 'scratch operand']
  %s0 = inlined_call_operand.hbm [shape: f32[8,4,256], index: 0, kind: input, shape index: {}]
  %s1 = inlined_call_operand.hbm [shape: f32[4,32], index: 1, kind: input, shape index: {}]
  %s2 = inlined_call_operand.hbm [shape: f32[1,32], index: 2, kind: input, shape index: {}]
  %s3 = inlined_call_operand.hbm [shape: f32[32,128], index: 3, kind: input, shape index: {}]
  %s4 = inlined_call_operand.hbm [shape: f32[1,128], index: 4, kind: input, shape index: {}]
  %s5 = inlined_call_operand.hbm [shape: f32[8,128], index: 5, kind: output, shape index: {}]
  %s6 = sld [smem:[#allocation0]]
  $region81: #{tpu_custom_call.1} parent=0
    _
  %s8 = ssub.s32 1, %s6
  %s9 = scalar_select 0, %s8, %s6
  $region1: #{tpu_custom_call.1} parent=0
    #allocation3 [shape = 'u8[32768]{0}', space=vmem, size = 0x8000, scoped, tag = 'input window, operand 0']
    #allocation4 [shape = 's32[2]{0}', space=sflag, size = 0x8, scoped, tag = 'scoped memory for tpu_custom_call.1']
    #allocation5 [shape = 's32[2]{0}', space=sflag, size = 0x8, scoped, tag = 'scoped memory for tpu_custom_call.1']
    #allocation6 [shape = 'u8[2048]{0}', space=vmem, size = 0x800, scoped, tag = 'input window, operand 1, single buffered']
    #allocation7 [shape = 's32[1]{0}', space=sflag, size = 0x4, scoped, tag = 'scoped memory for tpu_custom_call.1']
    #allocation8 [shape = 'u8[512]{0}', space=vmem, size = 0x400, scoped, tag = 'input window, operand 2, single buffered']
    #allocation9 [shape = 'u8[16384]{0}', space=vmem, size = 0x4000, scoped, tag = 'input window, operand 3, single buffered']
    #allocation10 [shape = 's32[1]{0}', space=sflag, size = 0x4, scoped, tag = 'scoped memory for tpu_custom_call.1']
    #allocation11 [shape = 'u8[512]{0}', space=vmem, size = 0x400, scoped, tag = 'input window, operand 4, single buffered']
    #allocation12 [shape = 'u8[4096]{0}', space=vmem, size = 0x1000, scoped, tag = 'output window, operand 0, single buffered']
    %10 = vsyncpa [#allocation4], 0
    %s11 = scalar_lea.sflag [#allocation4], 1
    %12 = vsyncpa %s11, 0
    %13 = vsyncpa [#allocation7], 0
    %14 = vsyncpa [#allocation10], 0
    %15 = vsyncpa [#allocation5], 0
    loop: start=0, step=1, limit=4
    $region2: #{tpu_custom_call.1} parent=1 // loop_pre_header
      _
    $region3: #{tpu_custom_call.1} parent=1 // loop_header
      %s17 = sphi 0, %s21
      %p18 = scmp.ge.s32.totalorder %s17, 4
      %s24 = sphi 0, %s36
      %s25 = sphi 0, %s32
      %s26 = sphi 0, %s24
      %s27 = sphi 0, %s25
      %s28 = sphi 0, %s26
      %s29 = sphi 0, %s27
      %s41 = sphi 0, %s43
      %s44 = sphi 0, %s41
      %s45 = sphi 0, %s44
      %s61 = sphi 0, %s45
      %s65 = sphi 0, %s65
      %s67 = sphi 0, %s65
      %s68 = sphi 0, %s67
      %s82 = sphi 0, %s68
      %s86 = sphi 0, %s86
      %s88 = sphi 0, %s86
      %s89 = sphi 0, %s88
      %s103 = sphi 0, %s89
      %s107 = sphi 0, %s107
      %s109 = sphi 0, %s107
      %s110 = sphi 0, %s109
      %s124 = sphi 0, %s110
      %s128 = sphi 0, %s128
      %s130 = sphi 0, %s128
      %s131 = sphi 0, %s130
      %s145 = sphi 0, %s131
      %s151 = sphi 0, %s153
      %s154 = sphi 0, %s151
      %s155 = sphi 0, %s154
      %s171 = sphi 0, %s155
    $region4: #{tpu_custom_call.1} parent=1 // loop_header_branch
      %20 = sbr.rel (%p18) target = $region8
    $region5: #{tpu_custom_call.1} parent=1 // loop_body
      %s22 = ssub.s32 %s17, 1
      %s23 = ssub.s32 %s17, 2
      %s30 = sadd.s32 1, %s25
      %p31 = scmp.ge.s32.totalorder %s30, 2
      %s32 = scalar_select %p31, 0, %s30
      %s33 = sadd.s32 1, %s24
      %s34 = scalar_select %p31, %s33, %s24
      %p35 = scmp.ge.s32.totalorder %s34, 1
      %s36 = scalar_select %p35, 0, %s34
      %s37 = ssub.s32 %s24, %s36
      %s38 = ssub.s32 %s25, %s32
      %s39 = sor.u32 %s37, %s38
      %p40 = scmp.eq.s32.totalorder %s39, 0
      %s42 = sadd.s32 %s41, 1
      %s43 = scalar_select %p40, %s41, %s42
      %p46 = pneg %p40
      %p47 = scmp.eq.s32.totalorder %s17, 1
      %p48 = por %p46, %p47
      %p49 = scmp.ne.s32.totalorder %s41, %s44
      %p50 = scmp.eq.s32.totalorder %s17, 0
      %p51 = por %p49, %p50
      %p52 = scmp.ne.s32.totalorder %s41, %s44
      %p53 = scmp.eq.s32.totalorder %s22, 1
      %p54 = por %p52, %p53
      %p55 = scmp.ne.s32.totalorder %s44, %s45
      %p56 = scmp.eq.s32.totalorder %s22, 0
      %p57 = por %p55, %p56
      %p58 = scmp.ne.s32.totalorder %s44, %s45
      %p59 = scmp.eq.s32.totalorder %s23, 1
      %p60 = por %p58, %p59
      %p62 = scmp.ne.s32.totalorder %s45, %s61
      %p63 = scmp.eq.s32.totalorder %s23, 0
      %p64 = por %p62, %p63
      %s66 = sadd.s32 %s65, 1
      %p69 = scmp.eq.s32.totalorder %s17, 1
      %p70 = scmp.ne.s32.totalorder %s65, %s67
      %p71 = scmp.eq.s32.totalorder %s17, 0
      %p72 = por %p70, %p71
      %p73 = scmp.ne.s32.totalorder %s65, %s67
      %p74 = scmp.eq.s32.totalorder %s22, 1
      %p75 = por %p73, %p74
      %p76 = scmp.ne.s32.totalorder %s67, %s68
      %p77 = scmp.eq.s32.totalorder %s22, 0
      %p78 = por %p76, %p77
      %p79 = scmp.ne.s32.totalorder %s67, %s68
      %p80 = scmp.eq.s32.totalorder %s23, 1
      %p81 = por %p79, %p80
      %p83 = scmp.ne.s32.totalorder %s68, %s82
      %p84 = scmp.eq.s32.totalorder %s23, 0
      %p85 = por %p83, %p84
      %s87 = sadd.s32 %s86, 1
      %p90 = scmp.eq.s32.totalorder %s17, 1
      %p91 = scmp.ne.s32.totalorder %s86, %s88
      %p92 = scmp.eq.s32.totalorder %s17, 0
      %p93 = por %p91, %p92
      %p94 = scmp.ne.s32.totalorder %s86, %s88
      %p95 = scmp.eq.s32.totalorder %s22, 1
      %p96 = por %p94, %p95
      %p97 = scmp.ne.s32.totalorder %s88, %s89
      %p98 = scmp.eq.s32.totalorder %s22, 0
      %p99 = por %p97, %p98
      %p100 = scmp.ne.s32.totalorder %s88, %s89
      %p101 = scmp.eq.s32.totalorder %s23, 1
      %p102 = por %p100, %p101
      %p104 = scmp.ne.s32.totalorder %s89, %s103
      %p105 = scmp.eq.s32.totalorder %s23, 0
      %p106 = por %p104, %p105
      %s108 = sadd.s32 %s107, 1
      %p111 = scmp.eq.s32.totalorder %s17, 1
      %p112 = scmp.ne.s32.totalorder %s107, %s109
      %p113 = scmp.eq.s32.totalorder %s17, 0
      %p114 = por %p112, %p113
      %p115 = scmp.ne.s32.totalorder %s107, %s109
      %p116 = scmp.eq.s32.totalorder %s22, 1
      %p117 = por %p115, %p116
      %p118 = scmp.ne.s32.totalorder %s109, %s110
      %p119 = scmp.eq.s32.totalorder %s22, 0
      %p120 = por %p118, %p119
      %p121 = scmp.ne.s32.totalorder %s109, %s110
      %p122 = scmp.eq.s32.totalorder %s23, 1
      %p123 = por %p121, %p122
      %p125 = scmp.ne.s32.totalorder %s110, %s124
      %p126 = scmp.eq.s32.totalorder %s23, 0
      %p127 = por %p125, %p126
      %s129 = sadd.s32 %s128, 1
      %p132 = scmp.eq.s32.totalorder %s17, 1
      %p133 = scmp.ne.s32.totalorder %s128, %s130
      %p134 = scmp.eq.s32.totalorder %s17, 0
      %p135 = por %p133, %p134
      %p136 = scmp.ne.s32.totalorder %s128, %s130
      %p137 = scmp.eq.s32.totalorder %s22, 1
      %p138 = por %p136, %p137
      %p139 = scmp.ne.s32.totalorder %s130, %s131
      %p140 = scmp.eq.s32.totalorder %s22, 0
      %p141 = por %p139, %p140
      %p142 = scmp.ne.s32.totalorder %s130, %s131
      %p143 = scmp.eq.s32.totalorder %s23, 1
      %p144 = por %p142, %p143
      %p146 = scmp.ne.s32.totalorder %s131, %s145
      %p147 = scmp.eq.s32.totalorder %s23, 0
      %p148 = por %p146, %p147
      %s149 = ssub.s32 %s24, %s36
      %p150 = scmp.eq.s32.totalorder %s149, 0
      %s152 = sadd.s32 %s151, 1
      %s153 = scalar_select %p150, %s151, %s152
      %p156 = pneg %p150
      %p157 = scmp.eq.s32.totalorder %s17, 1
      %p158 = por %p156, %p157
      %p159 = scmp.ne.s32.totalorder %s151, %s154
      %p160 = scmp.eq.s32.totalorder %s17, 0
      %p161 = por %p159, %p160
      %p162 = scmp.ne.s32.totalorder %s151, %s154
      %p163 = scmp.eq.s32.totalorder %s22, 1
      %p164 = por %p162, %p163
      %p165 = scmp.ne.s32.totalorder %s154, %s155
      %p166 = scmp.eq.s32.totalorder %s22, 0
      %p167 = por %p165, %p166
      %p168 = scmp.ne.s32.totalorder %s154, %s155
      %p169 = scmp.eq.s32.totalorder %s23, 1
      %p170 = por %p168, %p169
      %p172 = scmp.ne.s32.totalorder %s155, %s171
      %p173 = scmp.eq.s32.totalorder %s23, 0
      %p174 = por %p172, %p173
      %p175 = scmp.le.s32.totalorder 1, %s17
      %p176 = scmp.lt.s32.totalorder %s17, 3
      %p177 = pnand %p175, %p176
      %p178 = pneg %p177
      // Predicated region
      $region9: #{tpu_custom_call.1} parent=5 // pred_check
        _
      $region10: #{tpu_custom_call.1} parent=5 // pred_check_branch
        %180 = sbr.rel (%p177) target = $region12
      $region11: #{tpu_custom_call.1} parent=5 // pred_region
        %s181 = ssub.s32 %s17, 1
        // Predicated region
        $region13: #{tpu_custom_call.1} parent=11 // pred_check
          %p182 = pneg %p78
        $region14: #{tpu_custom_call.1} parent=11 // pred_check_branch
          %184 = sbr.rel (%p182) target = $region16
        $region15: #{tpu_custom_call.1} parent=11 // pred_region
          %s186 = ssub.s32 64, 64
          %187 = vsyncadd [#allocation7], %s186
          %s189 = sshll.u32 [#allocation6], 4
          %s190 = int_to_ptr.vmem [resolvable:$true] %s189
          %192 = dma.hbm_to_vmem [thread:$0]  %s1, 64, %s190, [#allocation7]
        $region16: #{tpu_custom_call.1} parent=11 // pred_fallthru
          _
        // Predicated region
        $region17: #{tpu_custom_call.1} parent=11 // pred_check
          %p193 = pneg %p99
        $region18: #{tpu_custom_call.1} parent=11 // pred_check_branch
          %195 = sbr.rel (%p193) target = $region20
        $region19: #{tpu_custom_call.1} parent=11 // pred_region
          %s197 = ssub.s32 16, 16
          %198 = vsyncadd [#allocation7], %s197
          %s200 = sshll.u32 [#allocation8], 4
          %s201 = int_to_ptr.vmem [resolvable:$true] %s200
          %203 = dma.hbm_to_vmem [thread:$0]  %s2, 16, %s201, [#allocation7]
        $region20: #{tpu_custom_call.1} parent=11 // pred_fallthru
          _
        // Predicated region
        $region21: #{tpu_custom_call.1} parent=11 // pred_check
          %p204 = pneg %p120
        $region22: #{tpu_custom_call.1} parent=11 // pred_check_branch
          %206 = sbr.rel (%p204) target = $region24
        $region23: #{tpu_custom_call.1} parent=11 // pred_region
          %s208 = ssub.s32 512, 512
          %209 = vsyncadd [#allocation10], %s208
          %s210 = sshll.u32 [#allocation9], 4
          %s211 = int_to_ptr.vmem [resolvable:$true] %s210
          %216 = dma.hbm_to_vmem [thread:$0]  %s3, 512, %s211, [#allocation10], 128, 128, 8
        $region24: #{tpu_custom_call.1} parent=11 // pred_fallthru
          _
        // Predicated region
        $region25: #{tpu_custom_call.1} parent=11 // pred_check
          %p217 = pneg %p141
        $region26: #{tpu_custom_call.1} parent=11 // pred_check_branch
          %219 = sbr.rel (%p217) target = $region28
        $region27: #{tpu_custom_call.1} parent=11 // pred_region
          %s221 = ssub.s32 16, 16
          %222 = vsyncadd [#allocation10], %s221
          %s224 = sshll.u32 [#allocation11], 4
          %s225 = int_to_ptr.vmem [resolvable:$true] %s224
          %227 = dma.hbm_to_vmem [thread:$0]  %s4, 16, %s225, [#allocation10]
        $region28: #{tpu_custom_call.1} parent=11 // pred_fallthru
          _
      $region12: #{tpu_custom_call.1} parent=5 // pred_fallthru
        _
      %p228 = scmp.lt.s32.totalorder %s17, 2
      // Predicated region
      $region29: #{tpu_custom_call.1} parent=5 // pred_check
        %p229 = pneg %p228
      $region30: #{tpu_custom_call.1} parent=5 // pred_check_branch
        %231 = sbr.rel (%p229) target = $region32
      $region31: #{tpu_custom_call.1} parent=5 // pred_region
        // Predicated region
        $region33: #{tpu_custom_call.1} parent=31 // pred_check
          %p232 = pneg %p51
        $region34: #{tpu_custom_call.1} parent=31 // pred_check_branch
          %234 = sbr.rel (%p232) target = $region36
        $region35: #{tpu_custom_call.1} parent=31 // pred_region
          %s235 = sand.u32 %s41, 1
          %s236 = scalar_lea.sflag [#allocation4], %s235
          %s237 = sand.u32 %s41, 1
          %s238 = smul.addr %s237, 32
          %s239 = scalar_lea.vmem [#allocation3], %s238
          %s240 = smul.u32 8, %s24
          %s242 = ssub.s32 512, 512
          %243 = vsyncadd %s236, %s242
          %s244 = smul.addr %s240, 2
          %s245 = sadd.s32 %s25, %s244
          %s246 = smul.addr %s245, 64
          %s247 = scalar_lea.hbm %s0, %s246
          %s248 = sshll.u32 %s239, 4
          %s249 = int_to_ptr.vmem [resolvable:$true] %s248
          %254 = dma.hbm_to_vmem [thread:$0]  %s247, 512, %s249, %s236, 128, 64, 4
        $region36: #{tpu_custom_call.1} parent=31 // pred_fallthru
          _
      $region32: #{tpu_custom_call.1} parent=5 // pred_fallthru
        _
      %p255 = scmp.le.s32.totalorder 1, %s17
      %p256 = scmp.lt.s32.totalorder %s17, 3
      %p257 = pnand %p255, %p256
      %p258 = pneg %p257
      // Predicated region
      $region37: #{tpu_custom_call.1} parent=5 // pred_check
        _
      $region38: #{tpu_custom_call.1} parent=5 // pred_check_branch
        %260 = sbr.rel (%p257) target = $region40
      $region39: #{tpu_custom_call.1} parent=5 // pred_region
        %s261 = ssub.s32 %s17, 1
        %s262 = sand.u32 %s44, 1
        %s263 = scalar_lea.sflag [#allocation4], %s262
        %s264 = sand.u32 %s44, 1
        %s265 = smul.addr %s264, 32
        %s266 = scalar_lea.vmem [#allocation3], %s265
        // Predicated region
        $region41: #{tpu_custom_call.1} parent=39 // pred_check
          %p267 = pneg %p57
        $region42: #{tpu_custom_call.1} parent=39 // pred_check_branch
          %269 = sbr.rel (%p267) target = $region44
        $region43: #{tpu_custom_call.1} parent=39 // pred_region
          %270 = dma.done %s263, 512
        $region44: #{tpu_custom_call.1} parent=39 // pred_fallthru
          _
        // Predicated region
        $region45: #{tpu_custom_call.1} parent=39 // pred_check
          %p271 = pneg %p78
        $region46: #{tpu_custom_call.1} parent=39 // pred_check_branch
          %273 = sbr.rel (%p271) target = $region48
        $region47: #{tpu_custom_call.1} parent=39 // pred_region
          %274 = dma.done [#allocation7], 64
        $region48: #{tpu_custom_call.1} parent=39 // pred_fallthru
          _
        // Predicated region
        $region49: #{tpu_custom_call.1} parent=39 // pred_check
          %p275 = pneg %p99
        $region50: #{tpu_custom_call.1} parent=39 // pred_check_branch
          %277 = sbr.rel (%p275) target = $region52
        $region51: #{tpu_custom_call.1} parent=39 // pred_region
          %278 = dma.done [#allocation7], 16
        $region52: #{tpu_custom_call.1} parent=39 // pred_fallthru
          _
        // Predicated region
        $region53: #{tpu_custom_call.1} parent=39 // pred_check
          %p279 = pneg %p120
        $region54: #{tpu_custom_call.1} parent=39 // pred_check_branch
          %281 = sbr.rel (%p279) target = $region56
        $region55: #{tpu_custom_call.1} parent=39 // pred_region
          %282 = dma.done [#allocation10], 512
        $region56: #{tpu_custom_call.1} parent=39 // pred_fallthru
          _
        // Predicated region
        $region57: #{tpu_custom_call.1} parent=39 // pred_check
          %p283 = pneg %p141
        $region58: #{tpu_custom_call.1} parent=39 // pred_check_branch
          %285 = sbr.rel (%p283) target = $region60
        $region59: #{tpu_custom_call.1} parent=39 // pred_region
          %286 = dma.done [#allocation10], 16
        $region60: #{tpu_custom_call.1} parent=39 // pred_fallthru
          _
        %s287 = sand.u32 %s44, 1
        %s288 = scalar_lea.sflag [#allocation4], %s287
        %s289 = sand.u32 %s44, 1
        %s290 = smul.addr %s289, 32
        %s291 = scalar_lea.vmem [#allocation3], %s290
        %p292 = pneg %p57
        %p293 = pneg %p54
        %p294 = pneg %p78
        %p295 = pneg %p75
        %p296 = pneg %p99
        %p297 = pneg %p96
        %p298 = pneg %p120
        %p299 = pneg %p117
        %p300 = pneg %p141
        %p301 = pneg %p138
        %p302 = pneg %p167
        %p303 = pneg %p164
        %s304 = smul.u32 8, %s26
        %p305 = scmp.eq.s32.totalorder %s27, 0
        // Predicated region
        $region61: #{tpu_custom_call.1} parent=39 // pred_check
          %p306 = pneg %p305
        $region62: #{tpu_custom_call.1} parent=39 // pred_check_branch
          %308 = sbr.rel (%p306) target = $region64
        $region63: #{tpu_custom_call.1} parent=39 // pred_region
          %309 = vst [vmem:[#allocation2] sm:$0xf] 0.0
          %310 = vst [vmem:[#allocation2 + $0x4] sm:$0xf] 0.0
          %311 = vst [vmem:[#allocation2 + $0x8] sm:$0xf] 0.0
          %312 = vst [vmem:[#allocation2 + $0xc] sm:$0xf] 0.0
          %313 = vst [vmem:[#allocation2 + $0x10] sm:$0xf] 0.0
          %314 = vst [vmem:[#allocation2 + $0x14] sm:$0xf] 0.0
          %315 = vst [vmem:[#allocation2 + $0x18] sm:$0xf] 0.0
          %316 = vst [vmem:[#allocation2 + $0x1c] sm:$0xf] 0.0
        $region64: #{tpu_custom_call.1} parent=39 // pred_fallthru
          _
        %v317 = vld [vmem:[#allocation2] sm:$0xf]
        %v318 = vld [vmem:[#allocation2 + $0x4] sm:$0xf]
        %v319 = vld [vmem:[#allocation2 + $0x8] sm:$0xf]
        %v320 = vld [vmem:[#allocation2 + $0xc] sm:$0xf]
        %v321 = vld [vmem:[#allocation2 + $0x10] sm:$0xf]
        %v322 = vld [vmem:[#allocation2 + $0x14] sm:$0xf]
        %v323 = vld [vmem:[#allocation2 + $0x18] sm:$0xf]
        %v324 = vld [vmem:[#allocation2 + $0x1c] sm:$0xf]
        %v325 = vld [vmem:[%s266] sm:$0xf]
        %v326 = vld [vmem:[%s266 + $0x4] sm:$0xf]
        %v327 = vld [vmem:[%s266 + $0x8] sm:$0xf]
        %v328 = vld [vmem:[%s266 + $0xc] sm:$0xf]
        %v329 = vld [vmem:[%s266 + $0x10] sm:$0xf]
        %v330 = vld [vmem:[%s266 + $0x14] sm:$0xf]
        %v331 = vld [vmem:[%s266 + $0x18] sm:$0xf]
        %v332 = vld [vmem:[%s266 + $0x1c] sm:$0xf]
        %v333 = vadd.f32 %v317, %v325
        %v334 = vadd.f32 %v318, %v326
        %v335 = vadd.f32 %v319, %v327
        %v336 = vadd.f32 %v320, %v328
        %v337 = vadd.f32 %v321, %v329
        %v338 = vadd.f32 %v322, %v330
        %v339 = vadd.f32 %v323, %v331
        %v340 = vadd.f32 %v324, %v332
        %341 = vst [vmem:[#allocation2] sm:$0xf] %v333
        %342 = vst [vmem:[#allocation2 + $0x4] sm:$0xf] %v334
        %343 = vst [vmem:[#allocation2 + $0x8] sm:$0xf] %v335
        %344 = vst [vmem:[#allocation2 + $0xc] sm:$0xf] %v336
        %345 = vst [vmem:[#allocation2 + $0x10] sm:$0xf] %v337
        %346 = vst [vmem:[#allocation2 + $0x14] sm:$0xf] %v338
        %347 = vst [vmem:[#allocation2 + $0x18] sm:$0xf] %v339
        %348 = vst [vmem:[#allocation2 + $0x1c] sm:$0xf] %v340
        %p349 = scmp.eq.s32.totalorder %s27, 1
        // Predicated region
        $region65: #{tpu_custom_call.1} parent=39 // pred_check
          %p350 = pneg %p349
        $region66: #{tpu_custom_call.1} parent=39 // pred_check_branch
          %352 = sbr.rel (%p350) target = $region68
        $region67: #{tpu_custom_call.1} parent=39 // pred_region
          %v353 = vld [vmem:[#allocation2] sm:$0xf]
          %v354 = vld [vmem:[#allocation2 + $0x4] sm:$0xf]
          %v355 = vld [vmem:[#allocation2 + $0x8] sm:$0xf]
          %v356 = vld [vmem:[#allocation2 + $0xc] sm:$0xf]
          %v357 = vld [vmem:[#allocation2 + $0x10] sm:$0xf]
          %v358 = vld [vmem:[#allocation2 + $0x14] sm:$0xf]
          %v359 = vld [vmem:[#allocation2 + $0x18] sm:$0xf]
          %v360 = vld [vmem:[#allocation2 + $0x1c] sm:$0xf]
          %vm361 = vcmask 1043456
          %v362 = vsel %vm361, %v353, 0.0
          %363 = vadd.xlane.f32.xlu0 %v362
          %v364 = vpop.xlane.xlu0 %363
          %v365 = vsel %vm361, %v354, 0.0
          %366 = vadd.xlane.f32.xlu0 %v365
          %v367 = vpop.xlane.xlu0 %366
          %v368 = vsel %vm361, %v355, 0.0
          %369 = vadd.xlane.f32.xlu0 %v368
          %v370 = vpop.xlane.xlu0 %369
          %v371 = vsel %vm361, %v356, 0.0
          %372 = vadd.xlane.f32.xlu0 %v371
          %v373 = vpop.xlane.xlu0 %372
          %v374 = vsel %vm361, %v357, 0.0
          %375 = vadd.xlane.f32.xlu0 %v374
          %v376 = vpop.xlane.xlu0 %375
          %v377 = vsel %vm361, %v358, 0.0
          %378 = vadd.xlane.f32.xlu0 %v377
          %v379 = vpop.xlane.xlu0 %378
          %v380 = vsel %vm361, %v359, 0.0
          %381 = vadd.xlane.f32.xlu0 %v380
          %v382 = vpop.xlane.xlu0 %381
          %v383 = vsel %vm361, %v360, 0.0
          %384 = vadd.xlane.f32.xlu0 %v383
          %v385 = vpop.xlane.xlu0 %384
          %v386 = vld [vmem:[#allocation6] sm:$0xf]
          %v387 = vld [vmem:[#allocation8] sm:$0x1]
          %v389 = vlaneseq
          %v390 = vshrl.u32 %v389, 7
          %v391 = vsub.s32 0, %v390
          %v392 = vrot.slane %v387, %v391
          %v402 = vlaneseq
          %v403 = vand.u32 %v402, 127
          %v404 = vlaneseq
          %v405 = vshrl.u32 %v404, 7
          %v406 = vsub.s32 %v403, %v405
          %v407 = vrot.slane %v364, %v406
          %v408 = vlaneseq
          %v409 = vshrl.u32 %v408, 7
          %v410 = vsub.s32 %v403, %v409
          %v411 = vrot.slane %v367, %v410
          %v412 = vlaneseq
          %v413 = vshrl.u32 %v412, 7
          %v414 = vsub.s32 %v403, %v413
          %v415 = vrot.slane %v370, %v414
          %v416 = vlaneseq
          %v417 = vshrl.u32 %v416, 7
          %v418 = vsub.s32 %v403, %v417
          %v419 = vrot.slane %v373, %v418
          %v420 = vlaneseq
          %v421 = vshrl.u32 %v420, 7
          %v422 = vsub.s32 %v403, %v421
          %v423 = vrot.slane %v376, %v422
          %v424 = vlaneseq
          %v425 = vshrl.u32 %v424, 7
          %v426 = vsub.s32 %v403, %v425
          %v427 = vrot.slane %v379, %v426
          %v428 = vlaneseq
          %v429 = vshrl.u32 %v428, 7
          %v430 = vsub.s32 %v403, %v429
          %v431 = vrot.slane %v382, %v430
          %v432 = vlaneseq
          %v433 = vshrl.u32 %v432, 7
          %v434 = vsub.s32 %v403, %v433
          %v435 = vrot.slane %v385, %v434
          %vm436 = vcmask 1041409
          %v437 = vsel %vm436, %v411, %v407
          %vm438 = vcmask 1042434
          %v439 = vsel %vm438, %v415, %v437
          %vm440 = vcmask 1043459
          %v441 = vsel %vm440, %v419, %v439
          %vm442 = vcmask 1044484
          %v443 = vsel %vm442, %v423, %v441
          %vm444 = vcmask 1045509
          %v445 = vsel %vm444, %v427, %v443
          %vm446 = vcmask 1046534
          %v447 = vsel %vm446, %v431, %v445
          %vm448 = vcmask 1047559
          %v449 = vsel %vm448, %v435, %v447
          %vm450 = vcmask 31744
          %v451 = vsel %vm450, %v449, 0
          %v454 = vsel %vm361, %v386, 0
          %456 = vmatprep.subr.mxu0 0.0
          %457 = vmatpush1.msra.mxu0 %v454
          %458 = vmatprep.subr.mxu0 0.0
          %459 = vmatpush1.msra.mxu0 0.0
          %460 = vmatprep.subr.mxu0 0.0
          %461 = vmatpush1.msra.mxu0 0.0
          %462 = vmatprep.subr.mxu0 0.0
          %463 = vmatpush1.msra.mxu0 0.0
          %464 = vmatprep.subr.mxu0 0.0
          %465 = vmatpush1.msra.mxu0 0.0
          %466 = vmatprep.subr.mxu0 0.0
          %467 = vmatpush1.msra.mxu0 0.0
          %468 = vmatprep.subr.mxu0 0.0
          %469 = vmatpush1.msra.mxu0 0.0
          %470 = vmatprep.subr.mxu0 0.0
          %471 = vmatpush1.msra.mxu0 0.0
          %472 = vmatprep.subr.mxu0 0.0
          %473 = vmatpush1.msra.mxu0 0.0
          %474 = vmatprep.subr.mxu0 0.0
          %475 = vmatpush1.msra.mxu0 0.0
          %476 = vmatprep.subr.mxu0 0.0
          %477 = vmatpush1.msra.mxu0 0.0
          %478 = vmatprep.subr.mxu0 0.0
          %479 = vmatpush1.msra.mxu0 0.0
          %480 = vmatprep.subr.mxu0 0.0
          %481 = vmatpush1.msra.mxu0 0.0
          %482 = vmatprep.subr.mxu0 0.0
          %483 = vmatpush1.msra.mxu0 0.0
          %484 = vmatprep.subr.mxu0 0.0
          %485 = vmatpush1.msra.mxu0 0.0
          %486 = vmatprep.subr.mxu0 0.0
          %487 = vmatpush1.msra.mxu0 0.0
          %488 = vmatprep.subr.mxu0 0.0
          %489 = vmatpush1.msra.mxu0 0.0
          %490 = vmatprep.subr.mxu0 0.0
          %491 = vmatpush1.msra.mxu0 0.0
          %492 = vmatprep.subr.mxu0 0.0
          %493 = vmatpush1.msra.mxu0 0.0
          %494 = vmatprep.subr.mxu0 0.0
          %495 = vmatpush1.msra.mxu0 0.0
          %496 = vmatprep.subr.mxu0 0.0
          %497 = vmatpush1.msra.mxu0 0.0
          %498 = vmatprep.subr.mxu0 0.0
          %499 = vmatpush1.msra.mxu0 0.0
          %500 = vmatprep.subr.mxu0 0.0
          %501 = vmatpush1.msra.mxu0 0.0
          %502 = vmatprep.subr.mxu0 0.0
          %503 = vmatpush1.msra.mxu0 0.0
          %504 = vmatprep.subr.mxu0 0.0
          %505 = vmatpush1.msra.mxu0 0.0
          %506 = vmatprep.subr.mxu0 0.0
          %507 = vmatpush1.msra.mxu0 0.0
          %508 = vmatprep.subr.mxu0 0.0
          %509 = vmatpush1.msra.mxu0 0.0
          %510 = vmatprep.subr.mxu0 0.0
          %511 = vmatpush1.msra.mxu0 0.0
          %512 = vmatprep.subr.mxu0 0.0
          %513 = vmatpush1.msra.mxu0 0.0
          %514 = vmatprep.subr.mxu0 0.0
          %515 = vmatpush1.msra.mxu0 0.0
          %516 = vmatprep.subr.mxu0 0.0
          %517 = vmatpush1.msra.mxu0 0.0
          %518 = vmatprep.subr.mxu0 0.0
          %519 = vmatpush1.msra.mxu0 0.0
          %520 = vmatprep.mubr.f32.mxu0 0.0
          %521 = vmatmul.mubr.f32.gmra.mrb[0].mxu0 %v451
          %v522 = vpop.f32.mrb[0].mxu0
          %v523 = vadd.f32 %v392, %v522
          %v524 = vpop.f32.mrb[0].mxu0
          %525 = vdwg.mxu0
          %v526 = vmax.f32 %v523, 0.0
          %v527 = vld [vmem:[#allocation9] sm:$0xff]
          %v528 = vld [vmem:[#allocation9 + $0x8] sm:$0xff]
          %v529 = vld [vmem:[#allocation9 + $0x10] sm:$0xff]
          %v530 = vld [vmem:[#allocation9 + $0x18] sm:$0xff]
          %v531 = vld [vmem:[#allocation11] sm:$0x1]
          %v533 = vlaneseq
          %v534 = vshrl.u32 %v533, 7
          %v535 = vsub.s32 0, %v534
          %v536 = vrot.slane %v531, %v535
          %vm538 = vcmask 261120
          %v540 = vsel %vm538, %v526, 0
          %542 = vmatprep.subr.mxu0 0.0
          %543 = vmatpush1.msra.mxu0 %v527
          %544 = vmatprep.subr.mxu0 0.0
          %545 = vmatpush1.msra.mxu0 %v528
          %546 = vmatprep.subr.mxu0 0.0
          %547 = vmatpush1.msra.mxu0 %v529
          %548 = vmatprep.subr.mxu0 0.0
          %549 = vmatpush1.msra.mxu0 %v530
          %550 = vmatprep.subr.mxu0 0.0
          %551 = vmatpush1.msra.mxu0 0.0
          %552 = vmatprep.subr.mxu0 0.0
          %553 = vmatpush1.msra.mxu0 0.0
          %554 = vmatprep.subr.mxu0 0.0
          %555 = vmatpush1.msra.mxu0 0.0
          %556 = vmatprep.subr.mxu0 0.0
          %557 = vmatpush1.msra.mxu0 0.0
          %558 = vmatprep.subr.mxu0 0.0
          %559 = vmatpush1.msra.mxu0 0.0
          %560 = vmatprep.subr.mxu0 0.0
          %561 = vmatpush1.msra.mxu0 0.0
          %562 = vmatprep.subr.mxu0 0.0
          %563 = vmatpush1.msra.mxu0 0.0
          %564 = vmatprep.subr.mxu0 0.0
          %565 = vmatpush1.msra.mxu0 0.0
          %566 = vmatprep.subr.mxu0 0.0
          %567 = vmatpush1.msra.mxu0 0.0
          %568 = vmatprep.subr.mxu0 0.0
          %569 = vmatpush1.msra.mxu0 0.0
          %570 = vmatprep.subr.mxu0 0.0
          %571 = vmatpush1.msra.mxu0 0.0
          %572 = vmatprep.subr.mxu0 0.0
          %573 = vmatpush1.msra.mxu0 0.0
          %574 = vmatprep.subr.mxu0 0.0
          %575 = vmatpush1.msra.mxu0 0.0
          %576 = vmatprep.subr.mxu0 0.0
          %577 = vmatpush1.msra.mxu0 0.0
          %578 = vmatprep.subr.mxu0 0.0
          %579 = vmatpush1.msra.mxu0 0.0
          %580 = vmatprep.subr.mxu0 0.0
          %581 = vmatpush1.msra.mxu0 0.0
          %582 = vmatprep.subr.mxu0 0.0
          %583 = vmatpush1.msra.mxu0 0.0
          %584 = vmatprep.subr.mxu0 0.0
          %585 = vmatpush1.msra.mxu0 0.0
          %586 = vmatprep.subr.mxu0 0.0
          %587 = vmatpush1.msra.mxu0 0.0
          %588 = vmatprep.subr.mxu0 0.0
          %589 = vmatpush1.msra.mxu0 0.0
          %590 = vmatprep.subr.mxu0 0.0
          %591 = vmatpush1.msra.mxu0 0.0
          %592 = vmatprep.subr.mxu0 0.0
          %593 = vmatpush1.msra.mxu0 0.0
          %594 = vmatprep.subr.mxu0 0.0
          %595 = vmatpush1.msra.mxu0 0.0
          %596 = vmatprep.subr.mxu0 0.0
          %597 = vmatpush1.msra.mxu0 0.0
          %598 = vmatprep.subr.mxu0 0.0
          %599 = vmatpush1.msra.mxu0 0.0
          %600 = vmatprep.subr.mxu0 0.0
          %601 = vmatpush1.msra.mxu0 0.0
          %602 = vmatprep.subr.mxu0 0.0
          %603 = vmatpush1.msra.mxu0 0.0
          %604 = vmatprep.subr.mxu0 0.0
          %605 = vmatpush1.msra.mxu0 0.0
          %606 = vmatprep.mubr.f32.mxu0 0.0
          %607 = vmatmul.mubr.f32.gmra.mrb[0].mxu0 %v540
          %v608 = vpop.f32.mrb[0].mxu0
          %v609 = vadd.f32 %v536, %v608
          %v610 = vpop.f32.mrb[0].mxu0
          %611 = vdwg.mxu0
          %612 = vst [vmem:[#allocation12] sm:$0xff] %v609
        $region68: #{tpu_custom_call.1} parent=39 // pred_fallthru
          _
        // Predicated region
        $region69: #{tpu_custom_call.1} parent=39 // pred_check
          %p613 = pneg %p164
        $region70: #{tpu_custom_call.1} parent=39 // pred_check_branch
          %615 = sbr.rel (%p613) target = $region72
        $region71: #{tpu_custom_call.1} parent=39 // pred_region
          %s617 = ssub.s32 128, 128
          %618 = vsyncadd [#allocation5], %s617
          %s619 = smul.addr %s26, 128
          %s620 = scalar_lea.hbm %s5, %s619
          %s622 = sshll.u32 [#allocation12], 4
          %s623 = int_to_ptr.vmem [resolvable:$true] %s622
          %625 = dma.vmem_to_hbm [thread:$0]  %s623, 128, %s620, [#allocation5]
        $region72: #{tpu_custom_call.1} parent=39 // pred_fallthru
          _
        // Predicated region
        $region73: #{tpu_custom_call.1} parent=39 // pred_check
          %p626 = pneg %p164
        $region74: #{tpu_custom_call.1} parent=39 // pred_check_branch
          %628 = sbr.rel (%p626) target = $region76
        $region75: #{tpu_custom_call.1} parent=39 // pred_region
          %629 = dma.done [#allocation5], 128
        $region76: #{tpu_custom_call.1} parent=39 // pred_fallthru
          _
      $region40: #{tpu_custom_call.1} parent=5 // pred_fallthru
        _
      %p630 = scmp.le.s32.totalorder 2, %s17
      // Predicated region
      $region77: #{tpu_custom_call.1} parent=5 // pred_check
        %p631 = pneg %p630
      $region78: #{tpu_custom_call.1} parent=5 // pred_check_branch
        %633 = sbr.rel (%p631) target = $region80
      $region79: #{tpu_custom_call.1} parent=5 // pred_region
        %s634 = ssub.s32 %s17, 2
      $region80: #{tpu_custom_call.1} parent=5 // pred_fallthru
        _
    $region6: #{tpu_custom_call.1} parent=1 // loop_footer
      %s21 = sadd.s32 1, %s17
    $region7: #{tpu_custom_call.1} parent=1 // loop_footer_branch
      %16 = sbr.rel target = $region3
    $region8: #{tpu_custom_call.1} parent=1 // loop_exit
      _
    %635 = vsyncpa [#allocation4], 1
    %s636 = scalar_lea.sflag [#allocation4], 1
    %637 = vsyncpa %s636, 1
    %638 = vsyncpa [#allocation7], 1
    %639 = vsyncpa [#allocation10], 1
    %640 = vsyncpa [#allocation5], 1
    %s641 = scalar_lea.sflag [#allocation5], 1
    %642 = vsyncpa %s641, 1

</llo_original>
